<compile_context>
chip_gen: v7x
topology: tpu7x:2x2x1
jax: 0.10.0
libtpu: 0.0.40
codegen_flags: <defaults>
</compile_context>

<pallas_src>
import jax
import jax.numpy as jnp
from jax.experimental import pallas as pl
from jax.experimental.pallas import tpu as pltpu


def _round_up(x, m):
    return (x + m - 1) // m * m


def _default_block_l():
    """Generation-aware default output-tile width (lane dim of the MXU N tile)."""
    try:
        kind = jax.devices()[0].device_kind.lower()
        if "v5 lite" in kind or "v5e" in kind:   # 128-wide MXU, smallest scoped VMEM
            return 128
    except Exception:
        pass
    return 256                                    # fills v6e/v7x 256-wide MXU


def _band_params(tl, ksz, stride):
    """(nb, n_front, shared): frames per band, zero-frames of front padding,
    and whether one banded D is shared by every time tile (tl % stride == 0)."""
    if tl % stride == 0:
        n_front = (ksz - 1) // stride
        nb = tl // stride + n_front
        return nb, n_front, True
    n_front = 0
    nb = (tl + ksz - 2) // stride + 1
    return nb, n_front, False


def _banded_decode_matrix(filters, stride, tl, nb, j_starts_d):
    """Banded overlap-add synthesis matrix for one coder.

    Returns D of shape (len(j_starts_d), nb * F, tl), f32, with
    D[l, j_rel*F + f, t_rel] = filters[f, (l*tl + t_rel) - stride*(j_starts_d[l] + j_rel)]
    when that filter index is in [0, ksz), else 0.  Frame indices may be negative
    or past n_frames; those rows multiply zero-padded spectrogram frames.
    """
    n_f, ksz = filters.shape
    d_tiles = len(j_starts_d)
    t_rel = jnp.arange(tl)
    j_rel = jnp.arange(nb)
    l_idx = jnp.arange(d_tiles)
    j0 = jnp.asarray(j_starts_d, dtype=jnp.int32)
    tau = (l_idx[:, None, None] * tl + t_rel[None, None, :]
           - stride * (j0[:, None, None] + j_rel[None, :, None]))        # (dt, nb, tl)
    valid = (tau >= 0) & (tau < ksz)
    gathered = filters[:, jnp.clip(tau, 0, ksz - 1)]                     # (F, dt, nb, tl)
    d = jnp.where(valid[None], gathered, 0.0)
    d = jnp.transpose(d, (1, 2, 0, 3)).reshape(d_tiles, nb * n_f, tl)    # K = j_rel*F + f
    return d


def _par_decoder_kernel(s_ref, d_ref, o_ref):
    # One bf16 MXU matmul per (coder, l-tile, m-tile) grid step, f32 accumulation.
    o_ref[...] = jnp.dot(
        s_ref[...], d_ref[...], preferred_element_type=jnp.float32
    ).astype(o_ref.dtype)


def make_par_decoder(filters_list, stride, n_frames, *, block_m=128, block_l=None,
                     vmem_budget_bytes=24 * 1024 * 1024):
    """Build a ParDecoder forward.  filters_list[i]: (n_filters, kernel_size).

    Banded decode matrices and all tiling decisions are made once here (static per
    model); the per-call path is band-gather + pad + one pallas_call + reshape.
    """
    n_coders = len(filters_list)
    n_f, ksz = filters_list[0].shape
    for f in filters_list:
        assert f.shape == (n_f, ksz), "all coders must share (n_filters, kernel)"
    out_len = (n_frames - 1) * stride + ksz

    if block_l is None:
        block_l = _default_block_l()
    assert block_l % 128 == 0 and block_m % 16 == 0

    # ---- choose (tl, tm_max) so the double-buffered working set fits the budget.
    tl = min(block_l, _round_up(out_len, 128))
    tm_max = block_m
    while True:
        nb, n_front, shared_d = _band_params(tl, ksz, stride)
        kb = nb * n_f
        kb_pad = _round_up(kb, 128)
        need = 2 * (2 * tm_max * kb_pad + 2 * kb_pad * tl + 4 * tm_max * tl)
        if need <= vmem_budget_bytes:
            break
        if tl > 128:
            tl -= 128
        elif tm_max > 16:
            tm_max //= 2
        else:
            raise ValueError("filterbank too large for the VMEM budget")
    l_pad = _round_up(out_len, tl)
    n_l = l_pad // tl
    vmem_limit = max(32 * 1024 * 1024, need + (4 << 20))

    # ---- per-tile band start frames (in un-padded frame coordinates).
    if shared_d:
        spf = tl // stride
        j_starts = [l * spf - n_front for l in range(n_l)]
        d_tiles = 1                       # identical D for every time tile
    else:
        j_starts = [max(0, -((-(l * tl - ksz + 1)) // stride)) for l in range(n_l)]
        d_tiles = n_l
    jg = [j + n_front for j in j_starts]  # gather starts in front-padded coords
    t_pad_frames = max(n_frames + n_front, max(jg) + nb)
    jidx = (jnp.asarray(jg, dtype=jnp.int32)[:, None]
            + jnp.arange(nb, dtype=jnp.int32)[None, :])          # (n_l, nb)

    # ---- precompute banded decode matrices (bf16 operands, f32 build).
    d_all = jnp.stack(
        [jnp.pad(_banded_decode_matrix(jnp.asarray(f, jnp.float32), stride, tl, nb,
                                       j_starts[:d_tiles]),
                 ((0, 0), (0, kb_pad - kb), (0, 0)))
         for f in filters_list],
        axis=0).astype(jnp.bfloat16)                              # (C, d_tiles, Kb_pad, tl)

    d_map = ((lambda c, l, m: (c, 0, 0, 0)) if d_tiles == 1
             else (lambda c, l, m: (c, l, 0, 0)))

    @jax.jit
    def apply(x):
        B, cx, fx, tx = x.shape
        assert fx == n_f and tx == n_frames, "input spec shape mismatch"
        n_dec = min(n_coders, cx)                       # torch: min(len(coders), x.shape[1])

        tm = min(tm_max, _round_up(B, 16))              # 16-row multiple (bf16 sublanes)
        m_pad = _round_up(B, tm)
        n_m = m_pad // tm

        # Banded spectrogram layout: (C, n_l, M_pad, Kb_pad), K ordered frame-major.
        # TODO(synk): for very long n_frames, do this band slicing in-kernel via
        # pl.ANY + manual DMA instead of materializing a banded copy in HBM.
        spec = jnp.transpose(x[:, :n_dec].astype(jnp.bfloat16), (1, 0, 3, 2))   # (C,B,T,F)
        spec = jnp.pad(spec, ((0, 0), (0, 0),
                              (n_front, t_pad_frames - n_front - n_frames), (0, 0)))
        bands = spec[:, :, jidx, :]                                             # (C,B,n_l,nb,F)
        bands = jnp.transpose(bands, (0, 2, 1, 3, 4)).reshape(n_dec, n_l, B, nb * n_f)
        bands = jnp.pad(bands, ((0, 0), (0, 0), (0, m_pad - B), (0, kb_pad - nb * n_f)))

        d_in = d_all[:n_dec]

        flops = 2 * n_dec * n_l * m_pad * kb_pad * tl
        bytes_acc = bands.size * 2 + d_in.size * 2 + m_pad * n_dec * l_pad * 4

        out = pl.pallas_call(
            _par_decoder_kernel,
            out_shape=jax.ShapeDtypeStruct((m_pad, n_dec * l_pad), jnp.float32),
            grid=(n_dec, n_l, n_m),
            in_specs=[
                # spec band tile: (tm, Kb_pad); changes every grid step.
                pl.BlockSpec((None, None, tm, kb_pad), lambda c, l, m: (c, l, m, 0)),
                # banded decode matrix: (Kb_pad, tl); resident across (l, m) when shared.
                pl.BlockSpec((None, None, kb_pad, tl), d_map),
            ],
            # Output columns flattened as coder*l_pad + t -> (B, C, L) is a free reshape.
            out_specs=pl.BlockSpec((tm, tl), lambda c, l, m: (m, c * n_l + l)),
            compiler_params=pltpu.CompilerParams(
                dimension_semantics=("parallel", "parallel", "parallel"),
                vmem_limit_bytes=vmem_limit),
            cost_estimate=pl.CostEstimate(flops=int(flops), transcendentals=0,
                                          bytes_accessed=int(bytes_acc)),
        )(bands, d_in)

        if m_pad != B:
            out = out[:B]
        out = out.reshape(B, n_dec, l_pad)
        if l_pad != out_len:
            out = out[:, :, :out_len]
        return out                                              # (B, n_dec, L), f32

    return apply


def _ref_conv_transpose(spec, filt, stride):
    """Pure-JAX conv_transpose1d (overlap-add) reference. spec: (B, F, T), f32."""
    B, F, T = spec.shape
    ksz = filt.shape[1]
    L = (T - 1) * stride + ksz
    frames = jnp.einsum('bft,fk->btk', spec, filt)              # (B, T, K)
    out = jnp.zeros((B, L), dtype=jnp.float32)
    for j in range(T):
        out = out.at[:, j * stride:j * stride + ksz].add(frames[:, j])
    return out


if __name__ == "__main__":
    # Small, deterministic configuration: (batch, n_coders, n_filters, n_frames).
    B, C, F, T = 2, 3, 64, 16
    ksz, stride = 16, 8
    L = (T - 1) * stride + ksz                                  # 136

    key = jax.random.PRNGKey(0)
    kx, kf = jax.random.split(key)
    filt_keys = jax.random.split(kf, C)
    filters = [jax.random.normal(k, (F, ksz), dtype=jnp.float32) / jnp.sqrt(ksz)
               for k in filt_keys]
    x = jax.random.normal(kx, (B, C, F, T), dtype=jnp.float32)

    decoder = make_par_decoder(filters, stride, n_frames=T)
    out = jax.block_until_ready(decoder(x))

    # Pure-JAX f32 reference of the exact ParDecoder semantics (decode + cat).
    ref = jnp.stack([_ref_conv_transpose(x[:, c], filters[c], stride) for c in range(C)],
                    axis=1)                                     # (B, C, L)

    assert out.shape == (B, C, L), out.shape
    err = float(jnp.max(jnp.abs(out.astype(jnp.float32) - ref)))
    scale = float(jnp.max(jnp.abs(ref)))
    # bf16 operands (f32 accumulation) -> relaxed tolerance vs the f32 reference.
    assert err <= 5e-2 * scale + 1e-2, (
        f"mismatch vs reference: max abs err {err}, ref scale {scale}")
    print("KERNEL_OK")
</pallas_src>

<mosaic_0001>
module attributes {stable_mosaic.version = 11 : i64} {
  func.func @_par_decoder_kernel(%arg0: i32, %arg1: i32, %arg2: i32, %arg3: memref<1x1x16x2176xbf16, #tpu.memory_space<vmem>>, %arg4: memref<1x1x2176x256xbf16, #tpu.memory_space<vmem>>, %arg5: memref<16x256xf32, #tpu.memory_space<vmem>>) attributes {dimension_semantics = [#tpu.dimension_semantics<parallel>, #tpu.dimension_semantics<parallel>, #tpu.dimension_semantics<parallel>], iteration_bounds = array<i64: 3, 1, 1>, scalar_prefetch = 0 : i64, scratch_operands = 0 : i64, tpu.core_type = #tpu.core_type<tc>, window_params = [{transform_indices = @transform_0, window_bounds = array<i64: 1, 1, 16, 2176>}, {transform_indices = @transform_1, window_bounds = array<i64: 1, 1, 2176, 256>}, {transform_indices = @transform_2, window_bounds = array<i64: 16, 256>}]} {
    %c0 = arith.constant 0 : index
    %c0_0 = arith.constant 0 : index
    %c0_1 = arith.constant 0 : index
    %c0_2 = arith.constant 0 : index
    %0 = vector.load %arg3[%c0, %c0_0, %c0_1, %c0_2] : memref<1x1x16x2176xbf16, #tpu.memory_space<vmem>>, vector<1x1x16x2176xbf16>
    %1 = vector.shape_cast %0 : vector<1x1x16x2176xbf16> to vector<16x2176xbf16>
    %c0_3 = arith.constant 0 : index
    %c0_4 = arith.constant 0 : index
    %c0_5 = arith.constant 0 : index
    %c0_6 = arith.constant 0 : index
    %2 = vector.load %arg4[%c0_3, %c0_4, %c0_5, %c0_6] : memref<1x1x2176x256xbf16, #tpu.memory_space<vmem>>, vector<1x1x2176x256xbf16>
    %3 = vector.shape_cast %2 : vector<1x1x2176x256xbf16> to vector<2176x256xbf16>
    %cst = arith.constant dense<0.000000e+00> : vector<16x256xf32>
    %4 = tpu.matmul %1, %3, %cst {dimension_numbers = #tpu.dot_dimension_numbers<[1], [0], [0], [1], [0, 0, 1, 1], [], []>} : vector<16x2176xbf16>, vector<2176x256xbf16>, vector<16x256xf32> -> vector<16x256xf32>
    %c0_7 = arith.constant 0 : index
    %c0_8 = arith.constant 0 : index
    %5 = vector.load %arg5[%c0_7, %c0_8] : memref<16x256xf32, #tpu.memory_space<vmem>>, vector<16x256xf32>
    tpu.vector_store %arg5[%c0_7, %c0_8], %4 {strides = array<i32>} : memref<16x256xf32, #tpu.memory_space<vmem>>, vector<16x256xf32>,
    return
  }
  func.func @transform_0(%arg0: i32, %arg1: i32, %arg2: i32) -> (i32, i32, i32, i32) {
    %c0_i32 = arith.constant 0 : i32
    %c0_i32_0 = arith.constant 0 : i32
    return %arg0, %arg1, %arg2, %c0_i32 : i32, i32, i32, i32
  }
  func.func @transform_1(%arg0: i32, %arg1: i32, %arg2: i32) -> (i32, i32, i32, i32) {
    %c0_i32 = arith.constant 0 : i32
    %c0_i32_0 = arith.constant 0 : i32
    %c0_i32_1 = arith.constant 0 : i32
    %c0_i32_2 = arith.constant 0 : i32
    return %arg0, %c0_i32, %c0_i32_0, %c0_i32_1 : i32, i32, i32, i32
  }
  func.func @transform_2(%arg0: i32, %arg1: i32, %arg2: i32) -> (i32, i32) {
    %c1_i32 = arith.constant 1 : i32
    %0 = arith.muli %arg0, %c1_i32 : i32
    %1 = arith.addi %0, %arg1 : i32
    %c0_i32 = arith.constant 0 : i32
    return %arg2, %1 : i32, i32
  }
}

</mosaic_0001>

<llo_original>
// kernel: apply.1
$region0: #{apply.1}
  #allocation0 [shape = 'u32[]', space=smem, size = 0x4, offset = 0x4, fixed_abs, tag = 'smem constant byte address 0x4 - core index']
  #allocation1 [shape = 'u32[144,128]{1,0:T(1,128)}', space=vmem, size = 0x12000, scoped, tag = 'internal scratch']
  %s0 = inlined_call_operand.vmem [shape: bf16[3,1,16,2176], index: 0, kind: input, shape index: {}]
  %s1 = inlined_call_operand.vmem [shape: bf16[3,1,2176,256], index: 1, kind: input, shape index: {}]
  %s2 = inlined_call_operand.vmem [shape: f32[16,768], index: 2, kind: output, shape index: {}]
  %s3 = sld [smem:[#allocation0]]
  $region60: #{apply.1} parent=0
    _
  %s5 = ssub.s32 1, %s3
  %s6 = scalar_select 0, %s5, %s3
  $region1: #{apply.1} parent=0
    #allocation2 [shape = 'u8[32768]{0}', space=vmem, size = 0x8000, scoped, tag = 'output window, operand 0']
    loop: start=0, step=1, limit=5
    $region2: #{apply.1} parent=1 // loop_pre_header
      _
    $region3: #{apply.1} parent=1 // loop_header
      %s8 = sphi 0, %s12
      %p9 = scmp.ge.s32.totalorder %s8, 5
      %s15 = sphi 0, %s34
      %s16 = sphi 0, %s30
      %s17 = sphi 0, %s26
      %s18 = sphi 0, %s15
      %s19 = sphi 0, %s16
      %s20 = sphi 0, %s17
      %s21 = sphi 0, %s18
      %s22 = sphi 0, %s19
      %s23 = sphi 0, %s20
      %s41 = sphi 0, %s43
      %s44 = sphi 0, %s41
      %s45 = sphi 0, %s44
      %s61 = sphi 0, %s45
      %s67 = sphi 0, %s69
      %s70 = sphi 0, %s67
      %s71 = sphi 0, %s70
      %s87 = sphi 0, %s71
      %s97 = sphi 0, %s99
      %s100 = sphi 0, %s97
      %s101 = sphi 0, %s100
      %s117 = sphi 0, %s101
    $region4: #{apply.1} parent=1 // loop_header_branch
      %11 = sbr.rel (%p9) target = $region8
    $region5: #{apply.1} parent=1 // loop_body
      %s13 = ssub.s32 %s8, 1
      %s14 = ssub.s32 %s8, 2
      %s24 = sadd.s32 1, %s17
      %p25 = scmp.ge.s32.totalorder %s24, 1
      %s26 = scalar_select %p25, 0, %s24
      %s27 = sadd.s32 1, %s16
      %s28 = scalar_select %p25, %s27, %s16
      %p29 = scmp.ge.s32.totalorder %s28, 1
      %s30 = scalar_select %p29, 0, %s28
      %s31 = sadd.s32 1, %s15
      %s32 = scalar_select %p29, %s31, %s15
      %p33 = scmp.ge.s32.totalorder %s32, 3
      %s34 = scalar_select %p33, 0, %s32
      %s35 = ssub.s32 %s15, %s34
      %s36 = ssub.s32 %s16, %s30
      %s37 = sor.u32 %s35, %s36
      %s38 = ssub.s32 %s17, %s26
      %s39 = sor.u32 %s37, %s38
      %p40 = scmp.eq.s32.totalorder %s39, 0
      %s42 = sadd.s32 %s41, 1
      %s43 = scalar_select %p40, %s41, %s42
      %p46 = pneg %p40
      %p47 = scmp.eq.s32.totalorder %s8, 2
      %p48 = por %p46, %p47
      %p49 = scmp.ne.s32.totalorder %s41, %s44
      %p50 = scmp.eq.s32.totalorder %s8, 0
      %p51 = por %p49, %p50
      %p52 = scmp.ne.s32.totalorder %s41, %s44
      %p53 = scmp.eq.s32.totalorder %s13, 2
      %p54 = por %p52, %p53
      %p55 = scmp.ne.s32.totalorder %s44, %s45
      %p56 = scmp.eq.s32.totalorder %s13, 0
      %p57 = por %p55, %p56
      %p58 = scmp.ne.s32.totalorder %s44, %s45
      %p59 = scmp.eq.s32.totalorder %s14, 2
      %p60 = por %p58, %p59
      %p62 = scmp.ne.s32.totalorder %s45, %s61
      %p63 = scmp.eq.s32.totalorder %s14, 0
      %p64 = por %p62, %p63
      %s65 = ssub.s32 %s15, %s34
      %p66 = scmp.eq.s32.totalorder %s65, 0
      %s68 = sadd.s32 %s67, 1
      %s69 = scalar_select %p66, %s67, %s68
      %p72 = pneg %p66
      %p73 = scmp.eq.s32.totalorder %s8, 2
      %p74 = por %p72, %p73
      %p75 = scmp.ne.s32.totalorder %s67, %s70
      %p76 = scmp.eq.s32.totalorder %s8, 0
      %p77 = por %p75, %p76
      %p78 = scmp.ne.s32.totalorder %s67, %s70
      %p79 = scmp.eq.s32.totalorder %s13, 2
      %p80 = por %p78, %p79
      %p81 = scmp.ne.s32.totalorder %s70, %s71
      %p82 = scmp.eq.s32.totalorder %s13, 0
      %p83 = por %p81, %p82
      %p84 = scmp.ne.s32.totalorder %s70, %s71
      %p85 = scmp.eq.s32.totalorder %s14, 2
      %p86 = por %p84, %p85
      %p88 = scmp.ne.s32.totalorder %s71, %s87
      %p89 = scmp.eq.s32.totalorder %s14, 0
      %p90 = por %p88, %p89
      %s91 = sadd.s32 %s15, %s16
      %s92 = sadd.s32 %s34, %s30
      %s93 = ssub.s32 %s17, %s26
      %s94 = ssub.s32 %s91, %s92
      %s95 = sor.u32 %s93, %s94
      %p96 = scmp.eq.s32.totalorder %s95, 0
      %s98 = sadd.s32 %s97, 1
      %s99 = scalar_select %p96, %s97, %s98
      %p102 = pneg %p96
      %p103 = scmp.eq.s32.totalorder %s8, 2
      %p104 = por %p102, %p103
      %p105 = scmp.ne.s32.totalorder %s97, %s100
      %p106 = scmp.eq.s32.totalorder %s8, 0
      %p107 = por %p105, %p106
      %p108 = scmp.ne.s32.totalorder %s97, %s100
      %p109 = scmp.eq.s32.totalorder %s13, 2
      %p110 = por %p108, %p109
      %p111 = scmp.ne.s32.totalorder %s100, %s101
      %p112 = scmp.eq.s32.totalorder %s13, 0
      %p113 = por %p111, %p112
      %p114 = scmp.ne.s32.totalorder %s100, %s101
      %p115 = scmp.eq.s32.totalorder %s14, 2
      %p116 = por %p114, %p115
      %p118 = scmp.ne.s32.totalorder %s101, %s117
      %p119 = scmp.eq.s32.totalorder %s14, 0
      %p120 = por %p118, %p119
      %p121 = scmp.le.s32.totalorder 1, %s8
      %p122 = scmp.lt.s32.totalorder %s8, 4
      %p123 = pnand %p121, %p122
      %p124 = pneg %p123
      // Predicated region
      $region9: #{apply.1} parent=5 // pred_check
        _
      $region10: #{apply.1} parent=5 // pred_check_branch
        %126 = sbr.rel (%p123) target = $region12
      $region11: #{apply.1} parent=5 // pred_region
        %s127 = ssub.s32 %s8, 1
      $region12: #{apply.1} parent=5 // pred_fallthru
        _
      %p128 = scmp.lt.s32.totalorder %s8, 3
      // Predicated region
      $region13: #{apply.1} parent=5 // pred_check
        %p129 = pneg %p128
      $region14: #{apply.1} parent=5 // pred_check_branch
        %131 = sbr.rel (%p129) target = $region16
      $region15: #{apply.1} parent=5 // pred_region
        // Predicated region
        $region17: #{apply.1} parent=15 // pred_check
          %p132 = pneg %p51
        $region18: #{apply.1} parent=15 // pred_check_branch
          %134 = sbr.rel (%p132) target = $region20
        $region19: #{apply.1} parent=15 // pred_region
          %s135 = smul.u32 2, %s17
          %p136 = scmp.lt.s32.totalorder %s15, 2
          %s137 = scalar_select %p136, %s15, 2
          %p138 = scmp.lt.s32.totalorder %s16, 0
          %s139 = scalar_select %p138, %s16, 0
          %p140 = scmp.lt.s32.totalorder %s135, 1
          %s141 = scalar_select %p140, %s135, 1
          %s142 = smul.addr %s141, 17
          %s143 = smul.addr %s139, 34
          %s144 = sadd.s32 %s142, %s143
          %s145 = smul.addr %s137, 34
          %s146 = sadd.s32 %s144, %s145
          %s147 = smul.addr %s146, 4
          %s148 = scalar_lea.vmem %s0, %s147
          %s149 = smul.u32 2, %s17
        $region20: #{apply.1} parent=15 // pred_fallthru
          _
        // Predicated region
        $region21: #{apply.1} parent=15 // pred_check
          %p150 = pneg %p77
        $region22: #{apply.1} parent=15 // pred_check_branch
          %152 = sbr.rel (%p150) target = $region24
        $region23: #{apply.1} parent=15 // pred_region
          %p153 = scmp.lt.s32.totalorder %s15, 2
          %s154 = scalar_select %p153, %s15, 2
          %s155 = smul.addr %s154, 544
          %s156 = smul.addr %s155, 4
          %s157 = scalar_lea.vmem %s1, %s156
        $region24: #{apply.1} parent=15 // pred_fallthru
          _
      $region16: #{apply.1} parent=5 // pred_fallthru
        _
      %p158 = scmp.le.s32.totalorder 1, %s8
      %p159 = scmp.lt.s32.totalorder %s8, 4
      %p160 = pnand %p158, %p159
      %p161 = pneg %p160
      // Predicated region
      $region25: #{apply.1} parent=5 // pred_check
        _
      $region26: #{apply.1} parent=5 // pred_check_branch
        %163 = sbr.rel (%p160) target = $region28
      $region27: #{apply.1} parent=5 // pred_region
        %s164 = ssub.s32 %s8, 1
        %s165 = smul.u32 2, %s20
        %p166 = scmp.lt.s32.totalorder %s18, 2
        %s167 = scalar_select %p166, %s18, 2
        %p168 = scmp.lt.s32.totalorder %s19, 0
        %s169 = scalar_select %p168, %s19, 0
        %p170 = scmp.lt.s32.totalorder %s165, 1
        %s171 = scalar_select %p170, %s165, 1
        %s172 = smul.addr %s171, 17
        %s173 = smul.addr %s169, 34
        %s174 = sadd.s32 %s172, %s173
        %s175 = smul.addr %s167, 34
        %s176 = sadd.s32 %s174, %s175
        %s177 = smul.addr %s176, 4
        %s178 = scalar_lea.vmem %s0, %s177
        %p179 = pneg %p57
        %p180 = pneg %p54
        %p181 = scmp.lt.s32.totalorder %s18, 2
        %s182 = scalar_select %p181, %s18, 2
        %s183 = smul.addr %s182, 544
        %s184 = smul.addr %s183, 4
        %s185 = scalar_lea.vmem %s1, %s184
        %p186 = pneg %p83
        %p187 = pneg %p80
        %p188 = pneg %p113
        %p189 = pneg %p110
        %s190 = sand.u32 %s100, 1
        %s191 = sand.u32 %s100, 1
        %s192 = smul.addr %s191, 32
        %s193 = scalar_lea.vmem [#allocation2], %s192
        %s194 = smul.u32 2, %s20
        %p195 = scmp.lt.s32.totalorder %s18, 2
        %s196 = scalar_select %p195, %s18, 2
        %p197 = scmp.lt.s32.totalorder %s19, 0
        %s198 = scalar_select %p197, %s19, 0
        %p199 = scmp.lt.s32.totalorder %s194, 1
        %s200 = scalar_select %p199, %s194, 1
        %s201 = smul.addr %s200, 17
        %s202 = smul.addr %s198, 34
        %s203 = sadd.s32 %s201, %s202
        %s204 = smul.addr %s196, 34
        %s205 = sadd.s32 %s203, %s204
        %s206 = smul.addr %s205, 4
        %s207 = scalar_lea.vmem %s0, %s206
        %s208 = smul.u32 2, %s20
        %p209 = scmp.lt.s32.totalorder %s18, 2
        %s210 = scalar_select %p209, %s18, 2
        %s211 = smul.addr %s210, 544
        %s212 = smul.addr %s211, 4
        %s213 = scalar_lea.vmem %s1, %s212
        %s214 = sadd.s32 %s18, %s19
        %s215 = smul.u32 2, %s20
        %s216 = smul.u32 2, %s214
        %v218 = vld [vmem:[%s207] sm:$0xff]
        %v219 = vld [vmem:[%s207 + $0x8] sm:$0xff]
        %v220 = vld [vmem:[%s207 + $0x10] sm:$0xff]
        %v221 = vld [vmem:[%s207 + $0x18] sm:$0xff]
        %v222 = vld [vmem:[%s207 + $0x20] sm:$0xff]
        %v223 = vld [vmem:[%s207 + $0x28] sm:$0xff]
        %v224 = vld [vmem:[%s207 + $0x30] sm:$0xff]
        %v225 = vld [vmem:[%s207 + $0x38] sm:$0xff]
        %v226 = vld [vmem:[%s207 + $0x40] sm:$0xf]
        %v227 = vld [vmem:[%s207 + $0x44] sm:$0xff]
        %v228 = vld [vmem:[%s207 + $0x4c] sm:$0xff]
        %v229 = vld [vmem:[%s207 + $0x54] sm:$0xff]
        %v230 = vld [vmem:[%s207 + $0x5c] sm:$0xff]
        %v231 = vld [vmem:[%s207 + $0x64] sm:$0xff]
        %v232 = vld [vmem:[%s207 + $0x6c] sm:$0xff]
        %v233 = vld [vmem:[%s207 + $0x74] sm:$0xff]
        %v234 = vld [vmem:[%s207 + $0x7c] sm:$0xff]
        %v235 = vld [vmem:[%s207 + $0x84] sm:$0xf]
        %v236 = vld [vmem:[%s213] sm:$0xff]
        %v237 = vld [vmem:[%s213 + $0x8] sm:$0xff]
        %v238 = vld [vmem:[%s213 + $0x10] sm:$0xff]
        %v239 = vld [vmem:[%s213 + $0x18] sm:$0xff]
        %v240 = vld [vmem:[%s213 + $0x20] sm:$0xff]
        %v241 = vld [vmem:[%s213 + $0x28] sm:$0xff]
        %v242 = vld [vmem:[%s213 + $0x30] sm:$0xff]
        %v243 = vld [vmem:[%s213 + $0x38] sm:$0xff]
        %v244 = vld [vmem:[%s213 + $0x40] sm:$0xff]
        %v245 = vld [vmem:[%s213 + $0x48] sm:$0xff]
        %v246 = vld [vmem:[%s213 + $0x50] sm:$0xff]
        %v247 = vld [vmem:[%s213 + $0x58] sm:$0xff]
        %v248 = vld [vmem:[%s213 + $0x60] sm:$0xff]
        %v249 = vld [vmem:[%s213 + $0x68] sm:$0xff]
        %v250 = vld [vmem:[%s213 + $0x70] sm:$0xff]
        %v251 = vld [vmem:[%s213 + $0x78] sm:$0xff]
        %v252 = vld [vmem:[%s213 + $0x80] sm:$0xff]
        %v253 = vld [vmem:[%s213 + $0x88] sm:$0xff]
        %v254 = vld [vmem:[%s213 + $0x90] sm:$0xff]
        %v255 = vld [vmem:[%s213 + $0x98] sm:$0xff]
        %v256 = vld [vmem:[%s213 + $0xa0] sm:$0xff]
        %v257 = vld [vmem:[%s213 + $0xa8] sm:$0xff]
        %v258 = vld [vmem:[%s213 + $0xb0] sm:$0xff]
        %v259 = vld [vmem:[%s213 + $0xb8] sm:$0xff]
        %v260 = vld [vmem:[%s213 + $0xc0] sm:$0xff]
        %v261 = vld [vmem:[%s213 + $0xc8] sm:$0xff]
        %v262 = vld [vmem:[%s213 + $0xd0] sm:$0xff]
        %v263 = vld [vmem:[%s213 + $0xd8] sm:$0xff]
        %v264 = vld [vmem:[%s213 + $0xe0] sm:$0xff]
        %v265 = vld [vmem:[%s213 + $0xe8] sm:$0xff]
        %v266 = vld [vmem:[%s213 + $0xf0] sm:$0xff]
        %v267 = vld [vmem:[%s213 + $0xf8] sm:$0xff]
        %v268 = vld [vmem:[%s213 + $0x100] sm:$0xff]
        %v269 = vld [vmem:[%s213 + $0x108] sm:$0xff]
        %v270 = vld [vmem:[%s213 + $0x110] sm:$0xff]
        %v271 = vld [vmem:[%s213 + $0x118] sm:$0xff]
        %v272 = vld [vmem:[%s213 + $0x120] sm:$0xff]
        %v273 = vld [vmem:[%s213 + $0x128] sm:$0xff]
        %v274 = vld [vmem:[%s213 + $0x130] sm:$0xff]
        %v275 = vld [vmem:[%s213 + $0x138] sm:$0xff]
        %v276 = vld [vmem:[%s213 + $0x140] sm:$0xff]
        %v277 = vld [vmem:[%s213 + $0x148] sm:$0xff]
        %v278 = vld [vmem:[%s213 + $0x150] sm:$0xff]
        %v279 = vld [vmem:[%s213 + $0x158] sm:$0xff]
        %v280 = vld [vmem:[%s213 + $0x160] sm:$0xff]
        %v281 = vld [vmem:[%s213 + $0x168] sm:$0xff]
        %v282 = vld [vmem:[%s213 + $0x170] sm:$0xff]
        %v283 = vld [vmem:[%s213 + $0x178] sm:$0xff]
        %v284 = vld [vmem:[%s213 + $0x180] sm:$0xff]
        %v285 = vld [vmem:[%s213 + $0x188] sm:$0xff]
        %v286 = vld [vmem:[%s213 + $0x190] sm:$0xff]
        %v287 = vld [vmem:[%s213 + $0x198] sm:$0xff]
        %v288 = vld [vmem:[%s213 + $0x1a0] sm:$0xff]
        %v289 = vld [vmem:[%s213 + $0x1a8] sm:$0xff]
        %v290 = vld [vmem:[%s213 + $0x1b0] sm:$0xff]
        %v291 = vld [vmem:[%s213 + $0x1b8] sm:$0xff]
        %v292 = vld [vmem:[%s213 + $0x1c0] sm:$0xff]
        %v293 = vld [vmem:[%s213 + $0x1c8] sm:$0xff]
        %v294 = vld [vmem:[%s213 + $0x1d0] sm:$0xff]
        %v295 = vld [vmem:[%s213 + $0x1d8] sm:$0xff]
        %v296 = vld [vmem:[%s213 + $0x1e0] sm:$0xff]
        %v297 = vld [vmem:[%s213 + $0x1e8] sm:$0xff]
        %v298 = vld [vmem:[%s213 + $0x1f0] sm:$0xff]
        %v299 = vld [vmem:[%s213 + $0x1f8] sm:$0xff]
        %v300 = vld [vmem:[%s213 + $0x200] sm:$0xff]
        %v301 = vld [vmem:[%s213 + $0x208] sm:$0xff]
        %v302 = vld [vmem:[%s213 + $0x210] sm:$0xff]
        %v303 = vld [vmem:[%s213 + $0x218] sm:$0xff]
        %v304 = vld [vmem:[%s213 + $0x220] sm:$0xff]
        %v305 = vld [vmem:[%s213 + $0x228] sm:$0xff]
        %v306 = vld [vmem:[%s213 + $0x230] sm:$0xff]
        %v307 = vld [vmem:[%s213 + $0x238] sm:$0xff]
        %v308 = vld [vmem:[%s213 + $0x240] sm:$0xff]
        %v309 = vld [vmem:[%s213 + $0x248] sm:$0xff]
        %v310 = vld [vmem:[%s213 + $0x250] sm:$0xff]
        %v311 = vld [vmem:[%s213 + $0x258] sm:$0xff]
        %v312 = vld [vmem:[%s213 + $0x260] sm:$0xff]
        %v313 = vld [vmem:[%s213 + $0x268] sm:$0xff]
        %v314 = vld [vmem:[%s213 + $0x270] sm:$0xff]
        %v315 = vld [vmem:[%s213 + $0x278] sm:$0xff]
        %v316 = vld [vmem:[%s213 + $0x280] sm:$0xff]
        %v317 = vld [vmem:[%s213 + $0x288] sm:$0xff]
        %v318 = vld [vmem:[%s213 + $0x290] sm:$0xff]
        %v319 = vld [vmem:[%s213 + $0x298] sm:$0xff]
        %v320 = vld [vmem:[%s213 + $0x2a0] sm:$0xff]
        %v321 = vld [vmem:[%s213 + $0x2a8] sm:$0xff]
        %v322 = vld [vmem:[%s213 + $0x2b0] sm:$0xff]
        %v323 = vld [vmem:[%s213 + $0x2b8] sm:$0xff]
        %v324 = vld [vmem:[%s213 + $0x2c0] sm:$0xff]
        %v325 = vld [vmem:[%s213 + $0x2c8] sm:$0xff]
        %v326 = vld [vmem:[%s213 + $0x2d0] sm:$0xff]
        %v327 = vld [vmem:[%s213 + $0x2d8] sm:$0xff]
        %v328 = vld [vmem:[%s213 + $0x2e0] sm:$0xff]
        %v329 = vld [vmem:[%s213 + $0x2e8] sm:$0xff]
        %v330 = vld [vmem:[%s213 + $0x2f0] sm:$0xff]
        %v331 = vld [vmem:[%s213 + $0x2f8] sm:$0xff]
        %v332 = vld [vmem:[%s213 + $0x300] sm:$0xff]
        %v333 = vld [vmem:[%s213 + $0x308] sm:$0xff]
        %v334 = vld [vmem:[%s213 + $0x310] sm:$0xff]
        %v335 = vld [vmem:[%s213 + $0x318] sm:$0xff]
        %v336 = vld [vmem:[%s213 + $0x320] sm:$0xff]
        %v337 = vld [vmem:[%s213 + $0x328] sm:$0xff]
        %v338 = vld [vmem:[%s213 + $0x330] sm:$0xff]
        %v339 = vld [vmem:[%s213 + $0x338] sm:$0xff]
        %v340 = vld [vmem:[%s213 + $0x340] sm:$0xff]
        %v341 = vld [vmem:[%s213 + $0x348] sm:$0xff]
        %v342 = vld [vmem:[%s213 + $0x350] sm:$0xff]
        %v343 = vld [vmem:[%s213 + $0x358] sm:$0xff]
        %v344 = vld [vmem:[%s213 + $0x360] sm:$0xff]
        %v345 = vld [vmem:[%s213 + $0x368] sm:$0xff]
        %v346 = vld [vmem:[%s213 + $0x370] sm:$0xff]
        %v347 = vld [vmem:[%s213 + $0x378] sm:$0xff]
        %v348 = vld [vmem:[%s213 + $0x380] sm:$0xff]
        %v349 = vld [vmem:[%s213 + $0x388] sm:$0xff]
        %v350 = vld [vmem:[%s213 + $0x390] sm:$0xff]
        %v351 = vld [vmem:[%s213 + $0x398] sm:$0xff]
        %v352 = vld [vmem:[%s213 + $0x3a0] sm:$0xff]
        %v353 = vld [vmem:[%s213 + $0x3a8] sm:$0xff]
        %v354 = vld [vmem:[%s213 + $0x3b0] sm:$0xff]
        %v355 = vld [vmem:[%s213 + $0x3b8] sm:$0xff]
        %v356 = vld [vmem:[%s213 + $0x3c0] sm:$0xff]
        %v357 = vld [vmem:[%s213 + $0x3c8] sm:$0xff]
        %v358 = vld [vmem:[%s213 + $0x3d0] sm:$0xff]
        %v359 = vld [vmem:[%s213 + $0x3d8] sm:$0xff]
        %v360 = vld [vmem:[%s213 + $0x3e0] sm:$0xff]
        %v361 = vld [vmem:[%s213 + $0x3e8] sm:$0xff]
        %v362 = vld [vmem:[%s213 + $0x3f0] sm:$0xff]
        %v363 = vld [vmem:[%s213 + $0x3f8] sm:$0xff]
        %v364 = vld [vmem:[%s213 + $0x400] sm:$0xff]
        %v365 = vld [vmem:[%s213 + $0x408] sm:$0xff]
        %v366 = vld [vmem:[%s213 + $0x410] sm:$0xff]
        %v367 = vld [vmem:[%s213 + $0x418] sm:$0xff]
        %v368 = vld [vmem:[%s213 + $0x420] sm:$0xff]
        %v369 = vld [vmem:[%s213 + $0x428] sm:$0xff]
        %v370 = vld [vmem:[%s213 + $0x430] sm:$0xff]
        %v371 = vld [vmem:[%s213 + $0x438] sm:$0xff]
        %v372 = vld [vmem:[%s213 + $0x440] sm:$0xff]
        %v373 = vld [vmem:[%s213 + $0x448] sm:$0xff]
        %v374 = vld [vmem:[%s213 + $0x450] sm:$0xff]
        %v375 = vld [vmem:[%s213 + $0x458] sm:$0xff]
        %v376 = vld [vmem:[%s213 + $0x460] sm:$0xff]
        %v377 = vld [vmem:[%s213 + $0x468] sm:$0xff]
        %v378 = vld [vmem:[%s213 + $0x470] sm:$0xff]
        %v379 = vld [vmem:[%s213 + $0x478] sm:$0xff]
        %v380 = vld [vmem:[%s213 + $0x480] sm:$0xff]
        %v381 = vld [vmem:[%s213 + $0x488] sm:$0xff]
        %v382 = vld [vmem:[%s213 + $0x490] sm:$0xff]
        %v383 = vld [vmem:[%s213 + $0x498] sm:$0xff]
        %v384 = vld [vmem:[%s213 + $0x4a0] sm:$0xff]
        %v385 = vld [vmem:[%s213 + $0x4a8] sm:$0xff]
        %v386 = vld [vmem:[%s213 + $0x4b0] sm:$0xff]
        %v387 = vld [vmem:[%s213 + $0x4b8] sm:$0xff]
        %v388 = vld [vmem:[%s213 + $0x4c0] sm:$0xff]
        %v389 = vld [vmem:[%s213 + $0x4c8] sm:$0xff]
        %v390 = vld [vmem:[%s213 + $0x4d0] sm:$0xff]
        %v391 = vld [vmem:[%s213 + $0x4d8] sm:$0xff]
        %v392 = vld [vmem:[%s213 + $0x4e0] sm:$0xff]
        %v393 = vld [vmem:[%s213 + $0x4e8] sm:$0xff]
        %v394 = vld [vmem:[%s213 + $0x4f0] sm:$0xff]
        %v395 = vld [vmem:[%s213 + $0x4f8] sm:$0xff]
        %v396 = vld [vmem:[%s213 + $0x500] sm:$0xff]
        %v397 = vld [vmem:[%s213 + $0x508] sm:$0xff]
        %v398 = vld [vmem:[%s213 + $0x510] sm:$0xff]
        %v399 = vld [vmem:[%s213 + $0x518] sm:$0xff]
        %v400 = vld [vmem:[%s213 + $0x520] sm:$0xff]
        %v401 = vld [vmem:[%s213 + $0x528] sm:$0xff]
        %v402 = vld [vmem:[%s213 + $0x530] sm:$0xff]
        %v403 = vld [vmem:[%s213 + $0x538] sm:$0xff]
        %v404 = vld [vmem:[%s213 + $0x540] sm:$0xff]
        %v405 = vld [vmem:[%s213 + $0x548] sm:$0xff]
        %v406 = vld [vmem:[%s213 + $0x550] sm:$0xff]
        %v407 = vld [vmem:[%s213 + $0x558] sm:$0xff]
        %v408 = vld [vmem:[%s213 + $0x560] sm:$0xff]
        %v409 = vld [vmem:[%s213 + $0x568] sm:$0xff]
        %v410 = vld [vmem:[%s213 + $0x570] sm:$0xff]
        %v411 = vld [vmem:[%s213 + $0x578] sm:$0xff]
        %v412 = vld [vmem:[%s213 + $0x580] sm:$0xff]
        %v413 = vld [vmem:[%s213 + $0x588] sm:$0xff]
        %v414 = vld [vmem:[%s213 + $0x590] sm:$0xff]
        %v415 = vld [vmem:[%s213 + $0x598] sm:$0xff]
        %v416 = vld [vmem:[%s213 + $0x5a0] sm:$0xff]
        %v417 = vld [vmem:[%s213 + $0x5a8] sm:$0xff]
        %v418 = vld [vmem:[%s213 + $0x5b0] sm:$0xff]
        %v419 = vld [vmem:[%s213 + $0x5b8] sm:$0xff]
        %v420 = vld [vmem:[%s213 + $0x5c0] sm:$0xff]
        %v421 = vld [vmem:[%s213 + $0x5c8] sm:$0xff]
        %v422 = vld [vmem:[%s213 + $0x5d0] sm:$0xff]
        %v423 = vld [vmem:[%s213 + $0x5d8] sm:$0xff]
        %v424 = vld [vmem:[%s213 + $0x5e0] sm:$0xff]
        %v425 = vld [vmem:[%s213 + $0x5e8] sm:$0xff]
        %v426 = vld [vmem:[%s213 + $0x5f0] sm:$0xff]
        %v427 = vld [vmem:[%s213 + $0x5f8] sm:$0xff]
        %v428 = vld [vmem:[%s213 + $0x600] sm:$0xff]
        %v429 = vld [vmem:[%s213 + $0x608] sm:$0xff]
        %v430 = vld [vmem:[%s213 + $0x610] sm:$0xff]
        %v431 = vld [vmem:[%s213 + $0x618] sm:$0xff]
        %v432 = vld [vmem:[%s213 + $0x620] sm:$0xff]
        %v433 = vld [vmem:[%s213 + $0x628] sm:$0xff]
        %v434 = vld [vmem:[%s213 + $0x630] sm:$0xff]
        %v435 = vld [vmem:[%s213 + $0x638] sm:$0xff]
        %v436 = vld [vmem:[%s213 + $0x640] sm:$0xff]
        %v437 = vld [vmem:[%s213 + $0x648] sm:$0xff]
        %v438 = vld [vmem:[%s213 + $0x650] sm:$0xff]
        %v439 = vld [vmem:[%s213 + $0x658] sm:$0xff]
        %v440 = vld [vmem:[%s213 + $0x660] sm:$0xff]
        %v441 = vld [vmem:[%s213 + $0x668] sm:$0xff]
        %v442 = vld [vmem:[%s213 + $0x670] sm:$0xff]
        %v443 = vld [vmem:[%s213 + $0x678] sm:$0xff]
        %v444 = vld [vmem:[%s213 + $0x680] sm:$0xff]
        %v445 = vld [vmem:[%s213 + $0x688] sm:$0xff]
        %v446 = vld [vmem:[%s213 + $0x690] sm:$0xff]
        %v447 = vld [vmem:[%s213 + $0x698] sm:$0xff]
        %v448 = vld [vmem:[%s213 + $0x6a0] sm:$0xff]
        %v449 = vld [vmem:[%s213 + $0x6a8] sm:$0xff]
        %v450 = vld [vmem:[%s213 + $0x6b0] sm:$0xff]
        %v451 = vld [vmem:[%s213 + $0x6b8] sm:$0xff]
        %v452 = vld [vmem:[%s213 + $0x6c0] sm:$0xff]
        %v453 = vld [vmem:[%s213 + $0x6c8] sm:$0xff]
        %v454 = vld [vmem:[%s213 + $0x6d0] sm:$0xff]
        %v455 = vld [vmem:[%s213 + $0x6d8] sm:$0xff]
        %v456 = vld [vmem:[%s213 + $0x6e0] sm:$0xff]
        %v457 = vld [vmem:[%s213 + $0x6e8] sm:$0xff]
        %v458 = vld [vmem:[%s213 + $0x6f0] sm:$0xff]
        %v459 = vld [vmem:[%s213 + $0x6f8] sm:$0xff]
        %v460 = vld [vmem:[%s213 + $0x700] sm:$0xff]
        %v461 = vld [vmem:[%s213 + $0x708] sm:$0xff]
        %v462 = vld [vmem:[%s213 + $0x710] sm:$0xff]
        %v463 = vld [vmem:[%s213 + $0x718] sm:$0xff]
        %v464 = vld [vmem:[%s213 + $0x720] sm:$0xff]
        %v465 = vld [vmem:[%s213 + $0x728] sm:$0xff]
        %v466 = vld [vmem:[%s213 + $0x730] sm:$0xff]
        %v467 = vld [vmem:[%s213 + $0x738] sm:$0xff]
        %v468 = vld [vmem:[%s213 + $0x740] sm:$0xff]
        %v469 = vld [vmem:[%s213 + $0x748] sm:$0xff]
        %v470 = vld [vmem:[%s213 + $0x750] sm:$0xff]
        %v471 = vld [vmem:[%s213 + $0x758] sm:$0xff]
        %v472 = vld [vmem:[%s213 + $0x760] sm:$0xff]
        %v473 = vld [vmem:[%s213 + $0x768] sm:$0xff]
        %v474 = vld [vmem:[%s213 + $0x770] sm:$0xff]
        %v475 = vld [vmem:[%s213 + $0x778] sm:$0xff]
        %v476 = vld [vmem:[%s213 + $0x780] sm:$0xff]
        %v477 = vld [vmem:[%s213 + $0x788] sm:$0xff]
        %v478 = vld [vmem:[%s213 + $0x790] sm:$0xff]
        %v479 = vld [vmem:[%s213 + $0x798] sm:$0xff]
        %v480 = vld [vmem:[%s213 + $0x7a0] sm:$0xff]
        %v481 = vld [vmem:[%s213 + $0x7a8] sm:$0xff]
        %v482 = vld [vmem:[%s213 + $0x7b0] sm:$0xff]
        %v483 = vld [vmem:[%s213 + $0x7b8] sm:$0xff]
        %v484 = vld [vmem:[%s213 + $0x7c0] sm:$0xff]
        %v485 = vld [vmem:[%s213 + $0x7c8] sm:$0xff]
        %v486 = vld [vmem:[%s213 + $0x7d0] sm:$0xff]
        %v487 = vld [vmem:[%s213 + $0x7d8] sm:$0xff]
        %v488 = vld [vmem:[%s213 + $0x7e0] sm:$0xff]
        %v489 = vld [vmem:[%s213 + $0x7e8] sm:$0xff]
        %v490 = vld [vmem:[%s213 + $0x7f0] sm:$0xff]
        %v491 = vld [vmem:[%s213 + $0x7f8] sm:$0xff]
        %v492 = vld [vmem:[%s213 + $0x800] sm:$0xff]
        %v493 = vld [vmem:[%s213 + $0x808] sm:$0xff]
        %v494 = vld [vmem:[%s213 + $0x810] sm:$0xff]
        %v495 = vld [vmem:[%s213 + $0x818] sm:$0xff]
        %v496 = vld [vmem:[%s213 + $0x820] sm:$0xff]
        %v497 = vld [vmem:[%s213 + $0x828] sm:$0xff]
        %v498 = vld [vmem:[%s213 + $0x830] sm:$0xff]
        %v499 = vld [vmem:[%s213 + $0x838] sm:$0xff]
        %v500 = vld [vmem:[%s213 + $0x840] sm:$0xff]
        %v501 = vld [vmem:[%s213 + $0x848] sm:$0xff]
        %v502 = vld [vmem:[%s213 + $0x850] sm:$0xff]
        %v503 = vld [vmem:[%s213 + $0x858] sm:$0xff]
        %v504 = vld [vmem:[%s213 + $0x860] sm:$0xff]
        %v505 = vld [vmem:[%s213 + $0x868] sm:$0xff]
        %v506 = vld [vmem:[%s213 + $0x870] sm:$0xff]
        %v507 = vld [vmem:[%s213 + $0x878] sm:$0xff]
        %v526 = vunpack.c.l.b16 %v218
        %v527 = vunpack.c.h.b16 %v218
        %v528 = vunpack.c.l.b16 %v219
        %v529 = vunpack.c.h.b16 %v219
        %v530 = vunpack.c.l.b16 %v220
        %v531 = vunpack.c.h.b16 %v220
        %v532 = vunpack.c.l.b16 %v221
        %v533 = vunpack.c.h.b16 %v221
        %v534 = vunpack.c.l.b16 %v222
        %v535 = vunpack.c.h.b16 %v222
        %v536 = vunpack.c.l.b16 %v223
        %v537 = vunpack.c.h.b16 %v223
        %v538 = vunpack.c.l.b16 %v224
        %v539 = vunpack.c.h.b16 %v224
        %v540 = vunpack.c.l.b16 %v225
        %v541 = vunpack.c.h.b16 %v225
        %v542 = vunpack.c.l.b16 %v226
        %v543 = vunpack.c.l.b16 %v227
        %v544 = vunpack.c.h.b16 %v227
        %v545 = vunpack.c.l.b16 %v228
        %v546 = vunpack.c.h.b16 %v228
        %v547 = vunpack.c.l.b16 %v229
        %v548 = vunpack.c.h.b16 %v229
        %v549 = vunpack.c.l.b16 %v230
        %v550 = vunpack.c.h.b16 %v230
        %v551 = vunpack.c.l.b16 %v231
        %v552 = vunpack.c.h.b16 %v231
        %v553 = vunpack.c.l.b16 %v232
        %v554 = vunpack.c.h.b16 %v232
        %v555 = vunpack.c.l.b16 %v233
        %v556 = vunpack.c.h.b16 %v233
        %v557 = vunpack.c.l.b16 %v234
        %v558 = vunpack.c.h.b16 %v234
        %v559 = vunpack.c.l.b16 %v235
        %v560 = vpack.c.b16 %v543, %v526
        %v561 = vpack.c.b16 %v544, %v527
        %v562 = vpack.c.b16 %v545, %v528
        %v563 = vpack.c.b16 %v546, %v529
        %v564 = vpack.c.b16 %v547, %v530
        %v565 = vpack.c.b16 %v548, %v531
        %v566 = vpack.c.b16 %v549, %v532
        %v567 = vpack.c.b16 %v550, %v533
        %v568 = vpack.c.b16 %v551, %v534
        %v569 = vpack.c.b16 %v552, %v535
        %v570 = vpack.c.b16 %v553, %v536
        %v571 = vpack.c.b16 %v554, %v537
        %v572 = vpack.c.b16 %v555, %v538
        %v573 = vpack.c.b16 %v556, %v539
        %v574 = vpack.c.b16 %v557, %v540
        %v575 = vpack.c.b16 %v558, %v541
        %v576 = vpack.c.b16 %v559, %v542
        %v866 = vunpack.c.l.b16 %v236
        %v867 = vunpack.c.h.b16 %v236
        %v868 = vunpack.c.l.b16 %v237
        %v869 = vunpack.c.h.b16 %v237
        %v870 = vunpack.c.l.b16 %v238
        %v871 = vunpack.c.h.b16 %v238
        %v872 = vunpack.c.l.b16 %v239
        %v873 = vunpack.c.h.b16 %v239
        %v874 = vunpack.c.l.b16 %v240
        %v875 = vunpack.c.h.b16 %v240
        %v876 = vunpack.c.l.b16 %v241
        %v877 = vunpack.c.h.b16 %v241
        %v878 = vunpack.c.l.b16 %v242
        %v879 = vunpack.c.h.b16 %v242
        %v880 = vunpack.c.l.b16 %v243
        %v881 = vunpack.c.h.b16 %v243
        %v882 = vunpack.c.l.b16 %v244
        %v883 = vunpack.c.h.b16 %v244
        %v884 = vunpack.c.l.b16 %v245
        %v885 = vunpack.c.h.b16 %v245
        %v886 = vunpack.c.l.b16 %v246
        %v887 = vunpack.c.h.b16 %v246
        %v888 = vunpack.c.l.b16 %v247
        %v889 = vunpack.c.h.b16 %v247
        %v890 = vunpack.c.l.b16 %v248
        %v891 = vunpack.c.h.b16 %v248
        %v892 = vunpack.c.l.b16 %v249
        %v893 = vunpack.c.h.b16 %v249
        %v894 = vunpack.c.l.b16 %v250
        %v895 = vunpack.c.h.b16 %v250
        %v896 = vunpack.c.l.b16 %v251
        %v897 = vunpack.c.h.b16 %v251
        %v898 = vunpack.c.l.b16 %v252
        %v899 = vunpack.c.h.b16 %v252
        %v900 = vunpack.c.l.b16 %v253
        %v901 = vunpack.c.h.b16 %v253
        %v902 = vunpack.c.l.b16 %v254
        %v903 = vunpack.c.h.b16 %v254
        %v904 = vunpack.c.l.b16 %v255
        %v905 = vunpack.c.h.b16 %v255
        %v906 = vunpack.c.l.b16 %v256
        %v907 = vunpack.c.h.b16 %v256
        %v908 = vunpack.c.l.b16 %v257
        %v909 = vunpack.c.h.b16 %v257
        %v910 = vunpack.c.l.b16 %v258
        %v911 = vunpack.c.h.b16 %v258
        %v912 = vunpack.c.l.b16 %v259
        %v913 = vunpack.c.h.b16 %v259
        %v914 = vunpack.c.l.b16 %v260
        %v915 = vunpack.c.h.b16 %v260
        %v916 = vunpack.c.l.b16 %v261
        %v917 = vunpack.c.h.b16 %v261
        %v918 = vunpack.c.l.b16 %v262
        %v919 = vunpack.c.h.b16 %v262
        %v920 = vunpack.c.l.b16 %v263
        %v921 = vunpack.c.h.b16 %v263
        %v922 = vunpack.c.l.b16 %v264
        %v923 = vunpack.c.h.b16 %v264
        %v924 = vunpack.c.l.b16 %v265
        %v925 = vunpack.c.h.b16 %v265
        %v926 = vunpack.c.l.b16 %v266
        %v927 = vunpack.c.h.b16 %v266
        %v928 = vunpack.c.l.b16 %v267
        %v929 = vunpack.c.h.b16 %v267
        %v930 = vunpack.c.l.b16 %v268
        %v931 = vunpack.c.h.b16 %v268
        %v932 = vunpack.c.l.b16 %v269
        %v933 = vunpack.c.h.b16 %v269
        %v934 = vunpack.c.l.b16 %v270
        %v935 = vunpack.c.h.b16 %v270
        %v936 = vunpack.c.l.b16 %v271
        %v937 = vunpack.c.h.b16 %v271
        %v938 = vunpack.c.l.b16 %v272
        %v939 = vunpack.c.h.b16 %v272
        %v940 = vunpack.c.l.b16 %v273
        %v941 = vunpack.c.h.b16 %v273
        %v942 = vunpack.c.l.b16 %v274
        %v943 = vunpack.c.h.b16 %v274
        %v944 = vunpack.c.l.b16 %v275
        %v945 = vunpack.c.h.b16 %v275
        %v946 = vunpack.c.l.b16 %v276
        %v947 = vunpack.c.h.b16 %v276
        %v948 = vunpack.c.l.b16 %v277
        %v949 = vunpack.c.h.b16 %v277
        %v950 = vunpack.c.l.b16 %v278
        %v951 = vunpack.c.h.b16 %v278
        %v952 = vunpack.c.l.b16 %v279
        %v953 = vunpack.c.h.b16 %v279
        %v954 = vunpack.c.l.b16 %v280
        %v955 = vunpack.c.h.b16 %v280
        %v956 = vunpack.c.l.b16 %v281
        %v957 = vunpack.c.h.b16 %v281
        %v958 = vunpack.c.l.b16 %v282
        %v959 = vunpack.c.h.b16 %v282
        %v960 = vunpack.c.l.b16 %v283
        %v961 = vunpack.c.h.b16 %v283
        %v962 = vunpack.c.l.b16 %v284
        %v963 = vunpack.c.h.b16 %v284
        %v964 = vunpack.c.l.b16 %v285
        %v965 = vunpack.c.h.b16 %v285
        %v966 = vunpack.c.l.b16 %v286
        %v967 = vunpack.c.h.b16 %v286
        %v968 = vunpack.c.l.b16 %v287
        %v969 = vunpack.c.h.b16 %v287
        %v970 = vunpack.c.l.b16 %v288
        %v971 = vunpack.c.h.b16 %v288
        %v972 = vunpack.c.l.b16 %v289
        %v973 = vunpack.c.h.b16 %v289
        %v974 = vunpack.c.l.b16 %v290
        %v975 = vunpack.c.h.b16 %v290
        %v976 = vunpack.c.l.b16 %v291
        %v977 = vunpack.c.h.b16 %v291
        %v978 = vunpack.c.l.b16 %v292
        %v979 = vunpack.c.h.b16 %v292
        %v980 = vunpack.c.l.b16 %v293
        %v981 = vunpack.c.h.b16 %v293
        %v982 = vunpack.c.l.b16 %v294
        %v983 = vunpack.c.h.b16 %v294
        %v984 = vunpack.c.l.b16 %v295
        %v985 = vunpack.c.h.b16 %v295
        %v986 = vunpack.c.l.b16 %v296
        %v987 = vunpack.c.h.b16 %v296
        %v988 = vunpack.c.l.b16 %v297
        %v989 = vunpack.c.h.b16 %v297
        %v990 = vunpack.c.l.b16 %v298
        %v991 = vunpack.c.h.b16 %v298
        %v992 = vunpack.c.l.b16 %v299
        %v993 = vunpack.c.h.b16 %v299
        %v994 = vunpack.c.l.b16 %v300
        %v995 = vunpack.c.h.b16 %v300
        %v996 = vunpack.c.l.b16 %v301
        %v997 = vunpack.c.h.b16 %v301
        %v998 = vunpack.c.l.b16 %v302
        %v999 = vunpack.c.h.b16 %v302
        %v1000 = vunpack.c.l.b16 %v303
        %v1001 = vunpack.c.h.b16 %v303
        %v1002 = vunpack.c.l.b16 %v304
        %v1003 = vunpack.c.h.b16 %v304
        %v1004 = vunpack.c.l.b16 %v305
        %v1005 = vunpack.c.h.b16 %v305
        %v1006 = vunpack.c.l.b16 %v306
        %v1007 = vunpack.c.h.b16 %v306
        %v1008 = vunpack.c.l.b16 %v307
        %v1009 = vunpack.c.h.b16 %v307
        %v1010 = vunpack.c.l.b16 %v308
        %v1011 = vunpack.c.h.b16 %v308
        %v1012 = vunpack.c.l.b16 %v309
        %v1013 = vunpack.c.h.b16 %v309
        %v1014 = vunpack.c.l.b16 %v310
        %v1015 = vunpack.c.h.b16 %v310
        %v1016 = vunpack.c.l.b16 %v311
        %v1017 = vunpack.c.h.b16 %v311
        %v1018 = vunpack.c.l.b16 %v312
        %v1019 = vunpack.c.h.b16 %v312
        %v1020 = vunpack.c.l.b16 %v313
        %v1021 = vunpack.c.h.b16 %v313
        %v1022 = vunpack.c.l.b16 %v314
        %v1023 = vunpack.c.h.b16 %v314
        %v1024 = vunpack.c.l.b16 %v315
        %v1025 = vunpack.c.h.b16 %v315
        %v1026 = vunpack.c.l.b16 %v316
        %v1027 = vunpack.c.h.b16 %v316
        %v1028 = vunpack.c.l.b16 %v317
        %v1029 = vunpack.c.h.b16 %v317
        %v1030 = vunpack.c.l.b16 %v318
        %v1031 = vunpack.c.h.b16 %v318
        %v1032 = vunpack.c.l.b16 %v319
        %v1033 = vunpack.c.h.b16 %v319
        %v1034 = vunpack.c.l.b16 %v320
        %v1035 = vunpack.c.h.b16 %v320
        %v1036 = vunpack.c.l.b16 %v321
        %v1037 = vunpack.c.h.b16 %v321
        %v1038 = vunpack.c.l.b16 %v322
        %v1039 = vunpack.c.h.b16 %v322
        %v1040 = vunpack.c.l.b16 %v323
        %v1041 = vunpack.c.h.b16 %v323
        %v1042 = vunpack.c.l.b16 %v324
        %v1043 = vunpack.c.h.b16 %v324
        %v1044 = vunpack.c.l.b16 %v325
        %v1045 = vunpack.c.h.b16 %v325
        %v1046 = vunpack.c.l.b16 %v326
        %v1047 = vunpack.c.h.b16 %v326
        %v1048 = vunpack.c.l.b16 %v327
        %v1049 = vunpack.c.h.b16 %v327
        %v1050 = vunpack.c.l.b16 %v328
        %v1051 = vunpack.c.h.b16 %v328
        %v1052 = vunpack.c.l.b16 %v329
        %v1053 = vunpack.c.h.b16 %v329
        %v1054 = vunpack.c.l.b16 %v330
        %v1055 = vunpack.c.h.b16 %v330
        %v1056 = vunpack.c.l.b16 %v331
        %v1057 = vunpack.c.h.b16 %v331
        %v1058 = vunpack.c.l.b16 %v332
        %v1059 = vunpack.c.h.b16 %v332
        %v1060 = vunpack.c.l.b16 %v333
        %v1061 = vunpack.c.h.b16 %v333
        %v1062 = vunpack.c.l.b16 %v334
        %v1063 = vunpack.c.h.b16 %v334
        %v1064 = vunpack.c.l.b16 %v335
        %v1065 = vunpack.c.h.b16 %v335
        %v1066 = vunpack.c.l.b16 %v336
        %v1067 = vunpack.c.h.b16 %v336
        %v1068 = vunpack.c.l.b16 %v337
        %v1069 = vunpack.c.h.b16 %v337
        %v1070 = vunpack.c.l.b16 %v338
        %v1071 = vunpack.c.h.b16 %v338
        %v1072 = vunpack.c.l.b16 %v339
        %v1073 = vunpack.c.h.b16 %v339
        %v1074 = vunpack.c.l.b16 %v340
        %v1075 = vunpack.c.h.b16 %v340
        %v1076 = vunpack.c.l.b16 %v341
        %v1077 = vunpack.c.h.b16 %v341
        %v1078 = vunpack.c.l.b16 %v342
        %v1079 = vunpack.c.h.b16 %v342
        %v1080 = vunpack.c.l.b16 %v343
        %v1081 = vunpack.c.h.b16 %v343
        %v1082 = vunpack.c.l.b16 %v344
        %v1083 = vunpack.c.h.b16 %v344
        %v1084 = vunpack.c.l.b16 %v345
        %v1085 = vunpack.c.h.b16 %v345
        %v1086 = vunpack.c.l.b16 %v346
        %v1087 = vunpack.c.h.b16 %v346
        %v1088 = vunpack.c.l.b16 %v347
        %v1089 = vunpack.c.h.b16 %v347
        %v1090 = vunpack.c.l.b16 %v348
        %v1091 = vunpack.c.h.b16 %v348
        %v1092 = vunpack.c.l.b16 %v349
        %v1093 = vunpack.c.h.b16 %v349
        %v1094 = vunpack.c.l.b16 %v350
        %v1095 = vunpack.c.h.b16 %v350
        %v1096 = vunpack.c.l.b16 %v351
        %v1097 = vunpack.c.h.b16 %v351
        %v1098 = vunpack.c.l.b16 %v352
        %v1099 = vunpack.c.h.b16 %v352
        %v1100 = vunpack.c.l.b16 %v353
        %v1101 = vunpack.c.h.b16 %v353
        %v1102 = vunpack.c.l.b16 %v354
        %v1103 = vunpack.c.h.b16 %v354
        %v1104 = vunpack.c.l.b16 %v355
        %v1105 = vunpack.c.h.b16 %v355
        %v1106 = vunpack.c.l.b16 %v356
        %v1107 = vunpack.c.h.b16 %v356
        %v1108 = vunpack.c.l.b16 %v357
        %v1109 = vunpack.c.h.b16 %v357
        %v1110 = vunpack.c.l.b16 %v358
        %v1111 = vunpack.c.h.b16 %v358
        %v1112 = vunpack.c.l.b16 %v359
        %v1113 = vunpack.c.h.b16 %v359
        %v1114 = vunpack.c.l.b16 %v360
        %v1115 = vunpack.c.h.b16 %v360
        %v1116 = vunpack.c.l.b16 %v361
        %v1117 = vunpack.c.h.b16 %v361
        %v1118 = vunpack.c.l.b16 %v362
        %v1119 = vunpack.c.h.b16 %v362
        %v1120 = vunpack.c.l.b16 %v363
        %v1121 = vunpack.c.h.b16 %v363
        %v1122 = vunpack.c.l.b16 %v364
        %v1123 = vunpack.c.h.b16 %v364
        %v1124 = vunpack.c.l.b16 %v365
        %v1125 = vunpack.c.h.b16 %v365
        %v1126 = vunpack.c.l.b16 %v366
        %v1127 = vunpack.c.h.b16 %v366
        %v1128 = vunpack.c.l.b16 %v367
        %v1129 = vunpack.c.h.b16 %v367
        %v1130 = vunpack.c.l.b16 %v368
        %v1131 = vunpack.c.h.b16 %v368
        %v1132 = vunpack.c.l.b16 %v369
        %v1133 = vunpack.c.h.b16 %v369
        %v1134 = vunpack.c.l.b16 %v370
        %v1135 = vunpack.c.h.b16 %v370
        %v1136 = vunpack.c.l.b16 %v371
        %v1137 = vunpack.c.h.b16 %v371
        %v1138 = vunpack.c.l.b16 %v372
        %v1139 = vunpack.c.h.b16 %v372
        %v1140 = vunpack.c.l.b16 %v373
        %v1141 = vunpack.c.h.b16 %v373
        %v1142 = vunpack.c.l.b16 %v374
        %v1143 = vunpack.c.h.b16 %v374
        %v1144 = vunpack.c.l.b16 %v375
        %v1145 = vunpack.c.h.b16 %v375
        %v1146 = vunpack.c.l.b16 %v376
        %v1147 = vunpack.c.h.b16 %v376
        %v1148 = vunpack.c.l.b16 %v377
        %v1149 = vunpack.c.h.b16 %v377
        %v1150 = vunpack.c.l.b16 %v378
        %v1151 = vunpack.c.h.b16 %v378
        %v1152 = vunpack.c.l.b16 %v379
        %v1153 = vunpack.c.h.b16 %v379
        %v1154 = vunpack.c.l.b16 %v380
        %v1155 = vunpack.c.h.b16 %v380
        %v1156 = vunpack.c.l.b16 %v381
        %v1157 = vunpack.c.h.b16 %v381
        %v1158 = vunpack.c.l.b16 %v382
        %v1159 = vunpack.c.h.b16 %v382
        %v1160 = vunpack.c.l.b16 %v383
        %v1161 = vunpack.c.h.b16 %v383
        %v1162 = vunpack.c.l.b16 %v384
        %v1163 = vunpack.c.h.b16 %v384
        %v1164 = vunpack.c.l.b16 %v385
        %v1165 = vunpack.c.h.b16 %v385
        %v1166 = vunpack.c.l.b16 %v386
        %v1167 = vunpack.c.h.b16 %v386
        %v1168 = vunpack.c.l.b16 %v387
        %v1169 = vunpack.c.h.b16 %v387
        %v1170 = vunpack.c.l.b16 %v388
        %v1171 = vunpack.c.h.b16 %v388
        %v1172 = vunpack.c.l.b16 %v389
        %v1173 = vunpack.c.h.b16 %v389
        %v1174 = vunpack.c.l.b16 %v390
        %v1175 = vunpack.c.h.b16 %v390
        %v1176 = vunpack.c.l.b16 %v391
        %v1177 = vunpack.c.h.b16 %v391
        %v1178 = vunpack.c.l.b16 %v392
        %v1179 = vunpack.c.h.b16 %v392
        %v1180 = vunpack.c.l.b16 %v393
        %v1181 = vunpack.c.h.b16 %v393
        %v1182 = vunpack.c.l.b16 %v394
        %v1183 = vunpack.c.h.b16 %v394
        %v1184 = vunpack.c.l.b16 %v395
        %v1185 = vunpack.c.h.b16 %v395
        %v1186 = vunpack.c.l.b16 %v396
        %v1187 = vunpack.c.h.b16 %v396
        %v1188 = vunpack.c.l.b16 %v397
        %v1189 = vunpack.c.h.b16 %v397
        %v1190 = vunpack.c.l.b16 %v398
        %v1191 = vunpack.c.h.b16 %v398
        %v1192 = vunpack.c.l.b16 %v399
        %v1193 = vunpack.c.h.b16 %v399
        %v1194 = vunpack.c.l.b16 %v400
        %v1195 = vunpack.c.h.b16 %v400
        %v1196 = vunpack.c.l.b16 %v401
        %v1197 = vunpack.c.h.b16 %v401
        %v1198 = vunpack.c.l.b16 %v402
        %v1199 = vunpack.c.h.b16 %v402
        %v1200 = vunpack.c.l.b16 %v403
        %v1201 = vunpack.c.h.b16 %v403
        %v1202 = vunpack.c.l.b16 %v404
        %v1203 = vunpack.c.h.b16 %v404
        %v1204 = vunpack.c.l.b16 %v405
        %v1205 = vunpack.c.h.b16 %v405
        %v1206 = vunpack.c.l.b16 %v406
        %v1207 = vunpack.c.h.b16 %v406
        %v1208 = vunpack.c.l.b16 %v407
        %v1209 = vunpack.c.h.b16 %v407
        %v1210 = vunpack.c.l.b16 %v408
        %v1211 = vunpack.c.h.b16 %v408
        %v1212 = vunpack.c.l.b16 %v409
        %v1213 = vunpack.c.h.b16 %v409
        %v1214 = vunpack.c.l.b16 %v410
        %v1215 = vunpack.c.h.b16 %v410
        %v1216 = vunpack.c.l.b16 %v411
        %v1217 = vunpack.c.h.b16 %v411
        %v1218 = vunpack.c.l.b16 %v412
        %v1219 = vunpack.c.h.b16 %v412
        %v1220 = vunpack.c.l.b16 %v413
        %v1221 = vunpack.c.h.b16 %v413
        %v1222 = vunpack.c.l.b16 %v414
        %v1223 = vunpack.c.h.b16 %v414
        %v1224 = vunpack.c.l.b16 %v415
        %v1225 = vunpack.c.h.b16 %v415
        %v1226 = vunpack.c.l.b16 %v416
        %v1227 = vunpack.c.h.b16 %v416
        %v1228 = vunpack.c.l.b16 %v417
        %v1229 = vunpack.c.h.b16 %v417
        %v1230 = vunpack.c.l.b16 %v418
        %v1231 = vunpack.c.h.b16 %v418
        %v1232 = vunpack.c.l.b16 %v419
        %v1233 = vunpack.c.h.b16 %v419
        %v1234 = vunpack.c.l.b16 %v420
        %v1235 = vunpack.c.h.b16 %v420
        %v1236 = vunpack.c.l.b16 %v421
        %v1237 = vunpack.c.h.b16 %v421
        %v1238 = vunpack.c.l.b16 %v422
        %v1239 = vunpack.c.h.b16 %v422
        %v1240 = vunpack.c.l.b16 %v423
        %v1241 = vunpack.c.h.b16 %v423
        %v1242 = vunpack.c.l.b16 %v424
        %v1243 = vunpack.c.h.b16 %v424
        %v1244 = vunpack.c.l.b16 %v425
        %v1245 = vunpack.c.h.b16 %v425
        %v1246 = vunpack.c.l.b16 %v426
        %v1247 = vunpack.c.h.b16 %v426
        %v1248 = vunpack.c.l.b16 %v427
        %v1249 = vunpack.c.h.b16 %v427
        %v1250 = vunpack.c.l.b16 %v428
        %v1251 = vunpack.c.h.b16 %v428
        %v1252 = vunpack.c.l.b16 %v429
        %v1253 = vunpack.c.h.b16 %v429
        %v1254 = vunpack.c.l.b16 %v430
        %v1255 = vunpack.c.h.b16 %v430
        %v1256 = vunpack.c.l.b16 %v431
        %v1257 = vunpack.c.h.b16 %v431
        %v1258 = vunpack.c.l.b16 %v432
        %v1259 = vunpack.c.h.b16 %v432
        %v1260 = vunpack.c.l.b16 %v433
        %v1261 = vunpack.c.h.b16 %v433
        %v1262 = vunpack.c.l.b16 %v434
        %v1263 = vunpack.c.h.b16 %v434
        %v1264 = vunpack.c.l.b16 %v435
        %v1265 = vunpack.c.h.b16 %v435
        %v1266 = vunpack.c.l.b16 %v436
        %v1267 = vunpack.c.h.b16 %v436
        %v1268 = vunpack.c.l.b16 %v437
        %v1269 = vunpack.c.h.b16 %v437
        %v1270 = vunpack.c.l.b16 %v438
        %v1271 = vunpack.c.h.b16 %v438
        %v1272 = vunpack.c.l.b16 %v439
        %v1273 = vunpack.c.h.b16 %v439
        %v1274 = vunpack.c.l.b16 %v440
        %v1275 = vunpack.c.h.b16 %v440
        %v1276 = vunpack.c.l.b16 %v441
        %v1277 = vunpack.c.h.b16 %v441
        %v1278 = vunpack.c.l.b16 %v442
        %v1279 = vunpack.c.h.b16 %v442
        %v1280 = vunpack.c.l.b16 %v443
        %v1281 = vunpack.c.h.b16 %v443
        %v1282 = vunpack.c.l.b16 %v444
        %v1283 = vunpack.c.h.b16 %v444
        %v1284 = vunpack.c.l.b16 %v445
        %v1285 = vunpack.c.h.b16 %v445
        %v1286 = vunpack.c.l.b16 %v446
        %v1287 = vunpack.c.h.b16 %v446
        %v1288 = vunpack.c.l.b16 %v447
        %v1289 = vunpack.c.h.b16 %v447
        %v1290 = vunpack.c.l.b16 %v448
        %v1291 = vunpack.c.h.b16 %v448
        %v1292 = vunpack.c.l.b16 %v449
        %v1293 = vunpack.c.h.b16 %v449
        %v1294 = vunpack.c.l.b16 %v450
        %v1295 = vunpack.c.h.b16 %v450
        %v1296 = vunpack.c.l.b16 %v451
        %v1297 = vunpack.c.h.b16 %v451
        %v1298 = vunpack.c.l.b16 %v452
        %v1299 = vunpack.c.h.b16 %v452
        %v1300 = vunpack.c.l.b16 %v453
        %v1301 = vunpack.c.h.b16 %v453
        %v1302 = vunpack.c.l.b16 %v454
        %v1303 = vunpack.c.h.b16 %v454
        %v1304 = vunpack.c.l.b16 %v455
        %v1305 = vunpack.c.h.b16 %v455
        %v1306 = vunpack.c.l.b16 %v456
        %v1307 = vunpack.c.h.b16 %v456
        %v1308 = vunpack.c.l.b16 %v457
        %v1309 = vunpack.c.h.b16 %v457
        %v1310 = vunpack.c.l.b16 %v458
        %v1311 = vunpack.c.h.b16 %v458
        %v1312 = vunpack.c.l.b16 %v459
        %v1313 = vunpack.c.h.b16 %v459
        %v1314 = vunpack.c.l.b16 %v460
        %v1315 = vunpack.c.h.b16 %v460
        %v1316 = vunpack.c.l.b16 %v461
        %v1317 = vunpack.c.h.b16 %v461
        %v1318 = vunpack.c.l.b16 %v462
        %v1319 = vunpack.c.h.b16 %v462
        %v1320 = vunpack.c.l.b16 %v463
        %v1321 = vunpack.c.h.b16 %v463
        %v1322 = vunpack.c.l.b16 %v464
        %v1323 = vunpack.c.h.b16 %v464
        %v1324 = vunpack.c.l.b16 %v465
        %v1325 = vunpack.c.h.b16 %v465
        %v1326 = vunpack.c.l.b16 %v466
        %v1327 = vunpack.c.h.b16 %v466
        %v1328 = vunpack.c.l.b16 %v467
        %v1329 = vunpack.c.h.b16 %v467
        %v1330 = vunpack.c.l.b16 %v468
        %v1331 = vunpack.c.h.b16 %v468
        %v1332 = vunpack.c.l.b16 %v469
        %v1333 = vunpack.c.h.b16 %v469
        %v1334 = vunpack.c.l.b16 %v470
        %v1335 = vunpack.c.h.b16 %v470
        %v1336 = vunpack.c.l.b16 %v471
        %v1337 = vunpack.c.h.b16 %v471
        %v1338 = vunpack.c.l.b16 %v472
        %v1339 = vunpack.c.h.b16 %v472
        %v1340 = vunpack.c.l.b16 %v473
        %v1341 = vunpack.c.h.b16 %v473
        %v1342 = vunpack.c.l.b16 %v474
        %v1343 = vunpack.c.h.b16 %v474
        %v1344 = vunpack.c.l.b16 %v475
        %v1345 = vunpack.c.h.b16 %v475
        %v1346 = vunpack.c.l.b16 %v476
        %v1347 = vunpack.c.h.b16 %v476
        %v1348 = vunpack.c.l.b16 %v477
        %v1349 = vunpack.c.h.b16 %v477
        %v1350 = vunpack.c.l.b16 %v478
        %v1351 = vunpack.c.h.b16 %v478
        %v1352 = vunpack.c.l.b16 %v479
        %v1353 = vunpack.c.h.b16 %v479
        %v1354 = vunpack.c.l.b16 %v480
        %v1355 = vunpack.c.h.b16 %v480
        %v1356 = vunpack.c.l.b16 %v481
        %v1357 = vunpack.c.h.b16 %v481
        %v1358 = vunpack.c.l.b16 %v482
        %v1359 = vunpack.c.h.b16 %v482
        %v1360 = vunpack.c.l.b16 %v483
        %v1361 = vunpack.c.h.b16 %v483
        %v1362 = vunpack.c.l.b16 %v484
        %v1363 = vunpack.c.h.b16 %v484
        %v1364 = vunpack.c.l.b16 %v485
        %v1365 = vunpack.c.h.b16 %v485
        %v1366 = vunpack.c.l.b16 %v486
        %v1367 = vunpack.c.h.b16 %v486
        %v1368 = vunpack.c.l.b16 %v487
        %v1369 = vunpack.c.h.b16 %v487
        %v1370 = vunpack.c.l.b16 %v488
        %v1371 = vunpack.c.h.b16 %v488
        %v1372 = vunpack.c.l.b16 %v489
        %v1373 = vunpack.c.h.b16 %v489
        %v1374 = vunpack.c.l.b16 %v490
        %v1375 = vunpack.c.h.b16 %v490
        %v1376 = vunpack.c.l.b16 %v491
        %v1377 = vunpack.c.h.b16 %v491
        %v1378 = vunpack.c.l.b16 %v492
        %v1379 = vunpack.c.h.b16 %v492
        %v1380 = vunpack.c.l.b16 %v493
        %v1381 = vunpack.c.h.b16 %v493
        %v1382 = vunpack.c.l.b16 %v494
        %v1383 = vunpack.c.h.b16 %v494
        %v1384 = vunpack.c.l.b16 %v495
        %v1385 = vunpack.c.h.b16 %v495
        %v1386 = vunpack.c.l.b16 %v496
        %v1387 = vunpack.c.h.b16 %v496
        %v1388 = vunpack.c.l.b16 %v497
        %v1389 = vunpack.c.h.b16 %v497
        %v1390 = vunpack.c.l.b16 %v498
        %v1391 = vunpack.c.h.b16 %v498
        %v1392 = vunpack.c.l.b16 %v499
        %v1393 = vunpack.c.h.b16 %v499
        %v1394 = vunpack.c.l.b16 %v500
        %v1395 = vunpack.c.h.b16 %v500
        %v1396 = vunpack.c.l.b16 %v501
        %v1397 = vunpack.c.h.b16 %v501
        %v1398 = vunpack.c.l.b16 %v502
        %v1399 = vunpack.c.h.b16 %v502
        %v1400 = vunpack.c.l.b16 %v503
        %v1401 = vunpack.c.h.b16 %v503
        %v1402 = vunpack.c.l.b16 %v504
        %v1403 = vunpack.c.h.b16 %v504
        %v1404 = vunpack.c.l.b16 %v505
        %v1405 = vunpack.c.h.b16 %v505
        %v1406 = vunpack.c.l.b16 %v506
        %v1407 = vunpack.c.h.b16 %v506
        %v1408 = vunpack.c.l.b16 %v507
        %v1409 = vunpack.c.h.b16 %v507
        %v1410 = vpack.c.b16 %v868, %v866
        %v1411 = vpack.c.b16 %v869, %v867
        %v1412 = vpack.c.b16 %v872, %v870
        %v1413 = vpack.c.b16 %v873, %v871
        %v1414 = vpack.c.b16 %v876, %v874
        %v1415 = vpack.c.b16 %v877, %v875
        %v1416 = vpack.c.b16 %v880, %v878
        %v1417 = vpack.c.b16 %v881, %v879
        %v1418 = vpack.c.b16 %v884, %v882
        %v1419 = vpack.c.b16 %v885, %v883
        %v1420 = vpack.c.b16 %v888, %v886
        %v1421 = vpack.c.b16 %v889, %v887
        %v1422 = vpack.c.b16 %v892, %v890
        %v1423 = vpack.c.b16 %v893, %v891
        %v1424 = vpack.c.b16 %v896, %v894
        %v1425 = vpack.c.b16 %v897, %v895
        %v1426 = vpack.c.b16 %v900, %v898
        %v1427 = vpack.c.b16 %v901, %v899
        %v1428 = vpack.c.b16 %v904, %v902
        %v1429 = vpack.c.b16 %v905, %v903
        %v1430 = vpack.c.b16 %v908, %v906
        %v1431 = vpack.c.b16 %v909, %v907
        %v1432 = vpack.c.b16 %v912, %v910
        %v1433 = vpack.c.b16 %v913, %v911
        %v1434 = vpack.c.b16 %v916, %v914
        %v1435 = vpack.c.b16 %v917, %v915
        %v1436 = vpack.c.b16 %v920, %v918
        %v1437 = vpack.c.b16 %v921, %v919
        %v1438 = vpack.c.b16 %v924, %v922
        %v1439 = vpack.c.b16 %v925, %v923
        %v1440 = vpack.c.b16 %v928, %v926
        %v1441 = vpack.c.b16 %v929, %v927
        %v1442 = vpack.c.b16 %v932, %v930
        %v1443 = vpack.c.b16 %v933, %v931
        %v1444 = vpack.c.b16 %v936, %v934
        %v1445 = vpack.c.b16 %v937, %v935
        %v1446 = vpack.c.b16 %v940, %v938
        %v1447 = vpack.c.b16 %v941, %v939
        %v1448 = vpack.c.b16 %v944, %v942
        %v1449 = vpack.c.b16 %v945, %v943
        %v1450 = vpack.c.b16 %v948, %v946
        %v1451 = vpack.c.b16 %v949, %v947
        %v1452 = vpack.c.b16 %v952, %v950
        %v1453 = vpack.c.b16 %v953, %v951
        %v1454 = vpack.c.b16 %v956, %v954
        %v1455 = vpack.c.b16 %v957, %v955
        %v1456 = vpack.c.b16 %v960, %v958
        %v1457 = vpack.c.b16 %v961, %v959
        %v1458 = vpack.c.b16 %v964, %v962
        %v1459 = vpack.c.b16 %v965, %v963
        %v1460 = vpack.c.b16 %v968, %v966
        %v1461 = vpack.c.b16 %v969, %v967
        %v1462 = vpack.c.b16 %v972, %v970
        %v1463 = vpack.c.b16 %v973, %v971
        %v1464 = vpack.c.b16 %v976, %v974
        %v1465 = vpack.c.b16 %v977, %v975
        %v1466 = vpack.c.b16 %v980, %v978
        %v1467 = vpack.c.b16 %v981, %v979
        %v1468 = vpack.c.b16 %v984, %v982
        %v1469 = vpack.c.b16 %v985, %v983
        %v1470 = vpack.c.b16 %v988, %v986
        %v1471 = vpack.c.b16 %v989, %v987
        %v1472 = vpack.c.b16 %v992, %v990
        %v1473 = vpack.c.b16 %v993, %v991
        %v1474 = vpack.c.b16 %v996, %v994
        %v1475 = vpack.c.b16 %v997, %v995
        %v1476 = vpack.c.b16 %v1000, %v998
        %v1477 = vpack.c.b16 %v1001, %v999
        %v1478 = vpack.c.b16 %v1004, %v1002
        %v1479 = vpack.c.b16 %v1005, %v1003
        %v1480 = vpack.c.b16 %v1008, %v1006
        %v1481 = vpack.c.b16 %v1009, %v1007
        %v1482 = vpack.c.b16 %v1012, %v1010
        %v1483 = vpack.c.b16 %v1013, %v1011
        %v1484 = vpack.c.b16 %v1016, %v1014
        %v1485 = vpack.c.b16 %v1017, %v1015
        %v1486 = vpack.c.b16 %v1020, %v1018
        %v1487 = vpack.c.b16 %v1021, %v1019
        %v1488 = vpack.c.b16 %v1024, %v1022
        %v1489 = vpack.c.b16 %v1025, %v1023
        %v1490 = vpack.c.b16 %v1028, %v1026
        %v1491 = vpack.c.b16 %v1029, %v1027
        %v1492 = vpack.c.b16 %v1032, %v1030
        %v1493 = vpack.c.b16 %v1033, %v1031
        %v1494 = vpack.c.b16 %v1036, %v1034
        %v1495 = vpack.c.b16 %v1037, %v1035
        %v1496 = vpack.c.b16 %v1040, %v1038
        %v1497 = vpack.c.b16 %v1041, %v1039
        %v1498 = vpack.c.b16 %v1044, %v1042
        %v1499 = vpack.c.b16 %v1045, %v1043
        %v1500 = vpack.c.b16 %v1048, %v1046
        %v1501 = vpack.c.b16 %v1049, %v1047
        %v1502 = vpack.c.b16 %v1052, %v1050
        %v1503 = vpack.c.b16 %v1053, %v1051
        %v1504 = vpack.c.b16 %v1056, %v1054
        %v1505 = vpack.c.b16 %v1057, %v1055
        %v1506 = vpack.c.b16 %v1060, %v1058
        %v1507 = vpack.c.b16 %v1061, %v1059
        %v1508 = vpack.c.b16 %v1064, %v1062
        %v1509 = vpack.c.b16 %v1065, %v1063
        %v1510 = vpack.c.b16 %v1068, %v1066
        %v1511 = vpack.c.b16 %v1069, %v1067
        %v1512 = vpack.c.b16 %v1072, %v1070
        %v1513 = vpack.c.b16 %v1073, %v1071
        %v1514 = vpack.c.b16 %v1076, %v1074
        %v1515 = vpack.c.b16 %v1077, %v1075
        %v1516 = vpack.c.b16 %v1080, %v1078
        %v1517 = vpack.c.b16 %v1081, %v1079
        %v1518 = vpack.c.b16 %v1084, %v1082
        %v1519 = vpack.c.b16 %v1085, %v1083
        %v1520 = vpack.c.b16 %v1088, %v1086
        %v1521 = vpack.c.b16 %v1089, %v1087
        %v1522 = vpack.c.b16 %v1092, %v1090
        %v1523 = vpack.c.b16 %v1093, %v1091
        %v1524 = vpack.c.b16 %v1096, %v1094
        %v1525 = vpack.c.b16 %v1097, %v1095
        %v1526 = vpack.c.b16 %v1100, %v1098
        %v1527 = vpack.c.b16 %v1101, %v1099
        %v1528 = vpack.c.b16 %v1104, %v1102
        %v1529 = vpack.c.b16 %v1105, %v1103
        %v1530 = vpack.c.b16 %v1108, %v1106
        %v1531 = vpack.c.b16 %v1109, %v1107
        %v1532 = vpack.c.b16 %v1112, %v1110
        %v1533 = vpack.c.b16 %v1113, %v1111
        %v1534 = vpack.c.b16 %v1116, %v1114
        %v1535 = vpack.c.b16 %v1117, %v1115
        %v1536 = vpack.c.b16 %v1120, %v1118
        %v1537 = vpack.c.b16 %v1121, %v1119
        %v1538 = vpack.c.b16 %v1124, %v1122
        %v1539 = vpack.c.b16 %v1125, %v1123
        %v1540 = vpack.c.b16 %v1128, %v1126
        %v1541 = vpack.c.b16 %v1129, %v1127
        %v1542 = vpack.c.b16 %v1132, %v1130
        %v1543 = vpack.c.b16 %v1133, %v1131
        %v1544 = vpack.c.b16 %v1136, %v1134
        %v1545 = vpack.c.b16 %v1137, %v1135
        %v1546 = vpack.c.b16 %v1140, %v1138
        %v1547 = vpack.c.b16 %v1141, %v1139
        %v1548 = vpack.c.b16 %v1144, %v1142
        %v1549 = vpack.c.b16 %v1145, %v1143
        %v1550 = vpack.c.b16 %v1148, %v1146
        %v1551 = vpack.c.b16 %v1149, %v1147
        %v1552 = vpack.c.b16 %v1152, %v1150
        %v1553 = vpack.c.b16 %v1153, %v1151
        %v1554 = vpack.c.b16 %v1156, %v1154
        %v1555 = vpack.c.b16 %v1157, %v1155
        %v1556 = vpack.c.b16 %v1160, %v1158
        %v1557 = vpack.c.b16 %v1161, %v1159
        %v1558 = vpack.c.b16 %v1164, %v1162
        %v1559 = vpack.c.b16 %v1165, %v1163
        %v1560 = vpack.c.b16 %v1168, %v1166
        %v1561 = vpack.c.b16 %v1169, %v1167
        %v1562 = vpack.c.b16 %v1172, %v1170
        %v1563 = vpack.c.b16 %v1173, %v1171
        %v1564 = vpack.c.b16 %v1176, %v1174
        %v1565 = vpack.c.b16 %v1177, %v1175
        %v1566 = vpack.c.b16 %v1180, %v1178
        %v1567 = vpack.c.b16 %v1181, %v1179
        %v1568 = vpack.c.b16 %v1184, %v1182
        %v1569 = vpack.c.b16 %v1185, %v1183
        %v1570 = vpack.c.b16 %v1188, %v1186
        %v1571 = vpack.c.b16 %v1189, %v1187
        %v1572 = vpack.c.b16 %v1192, %v1190
        %v1573 = vpack.c.b16 %v1193, %v1191
        %v1574 = vpack.c.b16 %v1196, %v1194
        %v1575 = vpack.c.b16 %v1197, %v1195
        %v1576 = vpack.c.b16 %v1200, %v1198
        %v1577 = vpack.c.b16 %v1201, %v1199
        %v1578 = vpack.c.b16 %v1204, %v1202
        %v1579 = vpack.c.b16 %v1205, %v1203
        %v1580 = vpack.c.b16 %v1208, %v1206
        %v1581 = vpack.c.b16 %v1209, %v1207
        %v1582 = vpack.c.b16 %v1212, %v1210
        %v1583 = vpack.c.b16 %v1213, %v1211
        %v1584 = vpack.c.b16 %v1216, %v1214
        %v1585 = vpack.c.b16 %v1217, %v1215
        %v1586 = vpack.c.b16 %v1220, %v1218
        %v1587 = vpack.c.b16 %v1221, %v1219
        %v1588 = vpack.c.b16 %v1224, %v1222
        %v1589 = vpack.c.b16 %v1225, %v1223
        %v1590 = vpack.c.b16 %v1228, %v1226
        %v1591 = vpack.c.b16 %v1229, %v1227
        %v1592 = vpack.c.b16 %v1232, %v1230
        %v1593 = vpack.c.b16 %v1233, %v1231
        %v1594 = vpack.c.b16 %v1236, %v1234
        %v1595 = vpack.c.b16 %v1237, %v1235
        %v1596 = vpack.c.b16 %v1240, %v1238
        %v1597 = vpack.c.b16 %v1241, %v1239
        %v1598 = vpack.c.b16 %v1244, %v1242
        %v1599 = vpack.c.b16 %v1245, %v1243
        %v1600 = vpack.c.b16 %v1248, %v1246
        %v1601 = vpack.c.b16 %v1249, %v1247
        %v1602 = vpack.c.b16 %v1252, %v1250
        %v1603 = vpack.c.b16 %v1253, %v1251
        %v1604 = vpack.c.b16 %v1256, %v1254
        %v1605 = vpack.c.b16 %v1257, %v1255
        %v1606 = vpack.c.b16 %v1260, %v1258
        %v1607 = vpack.c.b16 %v1261, %v1259
        %v1608 = vpack.c.b16 %v1264, %v1262
        %v1609 = vpack.c.b16 %v1265, %v1263
        %v1610 = vpack.c.b16 %v1268, %v1266
        %v1611 = vpack.c.b16 %v1269, %v1267
        %v1612 = vpack.c.b16 %v1272, %v1270
        %v1613 = vpack.c.b16 %v1273, %v1271
        %v1614 = vpack.c.b16 %v1276, %v1274
        %v1615 = vpack.c.b16 %v1277, %v1275
        %v1616 = vpack.c.b16 %v1280, %v1278
        %v1617 = vpack.c.b16 %v1281, %v1279
        %v1618 = vpack.c.b16 %v1284, %v1282
        %v1619 = vpack.c.b16 %v1285, %v1283
        %v1620 = vpack.c.b16 %v1288, %v1286
        %v1621 = vpack.c.b16 %v1289, %v1287
        %v1622 = vpack.c.b16 %v1292, %v1290
        %v1623 = vpack.c.b16 %v1293, %v1291
        %v1624 = vpack.c.b16 %v1296, %v1294
        %v1625 = vpack.c.b16 %v1297, %v1295
        %v1626 = vpack.c.b16 %v1300, %v1298
        %v1627 = vpack.c.b16 %v1301, %v1299
        %v1628 = vpack.c.b16 %v1304, %v1302
        %v1629 = vpack.c.b16 %v1305, %v1303
        %v1630 = vpack.c.b16 %v1308, %v1306
        %v1631 = vpack.c.b16 %v1309, %v1307
        %v1632 = vpack.c.b16 %v1312, %v1310
        %v1633 = vpack.c.b16 %v1313, %v1311
        %v1634 = vpack.c.b16 %v1316, %v1314
        %v1635 = vpack.c.b16 %v1317, %v1315
        %v1636 = vpack.c.b16 %v1320, %v1318
        %v1637 = vpack.c.b16 %v1321, %v1319
        %v1638 = vpack.c.b16 %v1324, %v1322
        %v1639 = vpack.c.b16 %v1325, %v1323
        %v1640 = vpack.c.b16 %v1328, %v1326
        %v1641 = vpack.c.b16 %v1329, %v1327
        %v1642 = vpack.c.b16 %v1332, %v1330
        %v1643 = vpack.c.b16 %v1333, %v1331
        %v1644 = vpack.c.b16 %v1336, %v1334
        %v1645 = vpack.c.b16 %v1337, %v1335
        %v1646 = vpack.c.b16 %v1340, %v1338
        %v1647 = vpack.c.b16 %v1341, %v1339
        %v1648 = vpack.c.b16 %v1344, %v1342
        %v1649 = vpack.c.b16 %v1345, %v1343
        %v1650 = vpack.c.b16 %v1348, %v1346
        %v1651 = vpack.c.b16 %v1349, %v1347
        %v1652 = vpack.c.b16 %v1352, %v1350
        %v1653 = vpack.c.b16 %v1353, %v1351
        %v1654 = vpack.c.b16 %v1356, %v1354
        %v1655 = vpack.c.b16 %v1357, %v1355
        %v1656 = vpack.c.b16 %v1360, %v1358
        %v1657 = vpack.c.b16 %v1361, %v1359
        %v1658 = vpack.c.b16 %v1364, %v1362
        %v1659 = vpack.c.b16 %v1365, %v1363
        %v1660 = vpack.c.b16 %v1368, %v1366
        %v1661 = vpack.c.b16 %v1369, %v1367
        %v1662 = vpack.c.b16 %v1372, %v1370
        %v1663 = vpack.c.b16 %v1373, %v1371
        %v1664 = vpack.c.b16 %v1376, %v1374
        %v1665 = vpack.c.b16 %v1377, %v1375
        %v1666 = vpack.c.b16 %v1380, %v1378
        %v1667 = vpack.c.b16 %v1381, %v1379
        %v1668 = vpack.c.b16 %v1384, %v1382
        %v1669 = vpack.c.b16 %v1385, %v1383
        %v1670 = vpack.c.b16 %v1388, %v1386
        %v1671 = vpack.c.b16 %v1389, %v1387
        %v1672 = vpack.c.b16 %v1392, %v1390
        %v1673 = vpack.c.b16 %v1393, %v1391
        %v1674 = vpack.c.b16 %v1396, %v1394
        %v1675 = vpack.c.b16 %v1397, %v1395
        %v1676 = vpack.c.b16 %v1400, %v1398
        %v1677 = vpack.c.b16 %v1401, %v1399
        %v1678 = vpack.c.b16 %v1404, %v1402
        %v1679 = vpack.c.b16 %v1405, %v1403
        %v1680 = vpack.c.b16 %v1408, %v1406
        %v1681 = vpack.c.b16 %v1409, %v1407
        %1954 = vmatprep.subr.bf16.mxu0 %v1411
        %1955 = vmatpush1.bf16.msra.mxu0 %v1410
        %1956 = vmatprep.subr.bf16.mxu0 %v1413
        %1957 = vmatpush1.bf16.msra.mxu0 %v1412
        %1958 = vmatprep.subr.bf16.mxu0 %v1415
        %1959 = vmatpush1.bf16.msra.mxu0 %v1414
        %1960 = vmatprep.subr.bf16.mxu0 %v1417
        %1961 = vmatpush1.bf16.msra.mxu0 %v1416
        %1962 = vmatprep.subr.bf16.mxu0 %v1419
        %1963 = vmatpush1.bf16.msra.mxu0 %v1418
        %1964 = vmatprep.subr.bf16.mxu0 %v1421
        %1965 = vmatpush1.bf16.msra.mxu0 %v1420
        %1966 = vmatprep.subr.bf16.mxu0 %v1423
        %1967 = vmatpush1.bf16.msra.mxu0 %v1422
        %1968 = vmatprep.subr.bf16.mxu0 %v1425
        %1969 = vmatpush1.bf16.msra.mxu0 %v1424
        %1970 = vmatprep.subr.bf16.mxu0 %v1427
        %1971 = vmatpush1.bf16.msra.mxu0 %v1426
        %1972 = vmatprep.subr.bf16.mxu0 %v1429
        %1973 = vmatpush1.bf16.msra.mxu0 %v1428
        %1974 = vmatprep.subr.bf16.mxu0 %v1431
        %1975 = vmatpush1.bf16.msra.mxu0 %v1430
        %1976 = vmatprep.subr.bf16.mxu0 %v1433
        %1977 = vmatpush1.bf16.msra.mxu0 %v1432
        %1978 = vmatprep.subr.bf16.mxu0 %v1435
        %1979 = vmatpush1.bf16.msra.mxu0 %v1434
        %1980 = vmatprep.subr.bf16.mxu0 %v1437
        %1981 = vmatpush1.bf16.msra.mxu0 %v1436
        %1982 = vmatprep.subr.bf16.mxu0 %v1439
        %1983 = vmatpush1.bf16.msra.mxu0 %v1438
        %1984 = vmatprep.subr.bf16.mxu0 %v1441
        %1985 = vmatpush1.bf16.msra.mxu0 %v1440
        %1986 = vmatprep.mubr.bf16.mxu0 %v561
        %1987 = vmatmul.mubr.bf16.gmra.mrb[0].mxu0 %v560
        %v1988 = vpop.f32.mrb[0].mxu0
        %v1989 = vadd.f32 0.0, %v1988
        %v1990 = vpop.f32.mrb[0].mxu0
        %v1991 = vadd.f32 0.0, %v1990
        %v1992 = vpop.f32.mrb[0].mxu0
        %v1993 = vadd.f32 0.0, %v1992
        %v1994 = vpop.f32.mrb[0].mxu0
        %v1995 = vadd.f32 0.0, %v1994
        %1996 = vdwg.mxu0
        %1997 = vmatprep.subr.bf16.mxu0 %v1443
        %1998 = vmatpush1.bf16.msra.mxu0 %v1442
        %1999 = vmatprep.subr.bf16.mxu0 %v1445
        %2000 = vmatpush1.bf16.msra.mxu0 %v1444
        %2001 = vmatprep.subr.bf16.mxu0 %v1447
        %2002 = vmatpush1.bf16.msra.mxu0 %v1446
        %2003 = vmatprep.subr.bf16.mxu0 %v1449
        %2004 = vmatpush1.bf16.msra.mxu0 %v1448
        %2005 = vmatprep.subr.bf16.mxu0 %v1451
        %2006 = vmatpush1.bf16.msra.mxu0 %v1450
        %2007 = vmatprep.subr.bf16.mxu0 %v1453
        %2008 = vmatpush1.bf16.msra.mxu0 %v1452
        %2009 = vmatprep.subr.bf16.mxu0 %v1455
        %2010 = vmatpush1.bf16.msra.mxu0 %v1454
        %2011 = vmatprep.subr.bf16.mxu0 %v1457
        %2012 = vmatpush1.bf16.msra.mxu0 %v1456
        %2013 = vmatprep.subr.bf16.mxu0 %v1459
        %2014 = vmatpush1.bf16.msra.mxu0 %v1458
        %2015 = vmatprep.subr.bf16.mxu0 %v1461
        %2016 = vmatpush1.bf16.msra.mxu0 %v1460
        %2017 = vmatprep.subr.bf16.mxu0 %v1463
        %2018 = vmatpush1.bf16.msra.mxu0 %v1462
        %2019 = vmatprep.subr.bf16.mxu0 %v1465
        %2020 = vmatpush1.bf16.msra.mxu0 %v1464
        %2021 = vmatprep.subr.bf16.mxu0 %v1467
        %2022 = vmatpush1.bf16.msra.mxu0 %v1466
        %2023 = vmatprep.subr.bf16.mxu0 %v1469
        %2024 = vmatpush1.bf16.msra.mxu0 %v1468
        %2025 = vmatprep.subr.bf16.mxu0 %v1471
        %2026 = vmatpush1.bf16.msra.mxu0 %v1470
        %2027 = vmatprep.subr.bf16.mxu0 %v1473
        %2028 = vmatpush1.bf16.msra.mxu0 %v1472
        %2029 = vmatprep.mubr.bf16.mxu0 %v563
        %2030 = vmatmul.mubr.bf16.gmra.mrb[0].mxu0 %v562
        %v2031 = vpop.f32.mrb[0].mxu0
        %v2032 = vadd.f32 %v1989, %v2031
        %v2033 = vpop.f32.mrb[0].mxu0
        %v2034 = vadd.f32 %v1991, %v2033
        %v2035 = vpop.f32.mrb[0].mxu0
        %v2036 = vadd.f32 %v1993, %v2035
        %v2037 = vpop.f32.mrb[0].mxu0
        %v2038 = vadd.f32 %v1995, %v2037
        %2039 = vdwg.mxu0
        %2040 = vmatprep.subr.bf16.mxu0 %v1475
        %2041 = vmatpush1.bf16.msra.mxu0 %v1474
        %2042 = vmatprep.subr.bf16.mxu0 %v1477
        %2043 = vmatpush1.bf16.msra.mxu0 %v1476
        %2044 = vmatprep.subr.bf16.mxu0 %v1479
        %2045 = vmatpush1.bf16.msra.mxu0 %v1478
        %2046 = vmatprep.subr.bf16.mxu0 %v1481
        %2047 = vmatpush1.bf16.msra.mxu0 %v1480
        %2048 = vmatprep.subr.bf16.mxu0 %v1483
        %2049 = vmatpush1.bf16.msra.mxu0 %v1482
        %2050 = vmatprep.subr.bf16.mxu0 %v1485
        %2051 = vmatpush1.bf16.msra.mxu0 %v1484
        %2052 = vmatprep.subr.bf16.mxu0 %v1487
        %2053 = vmatpush1.bf16.msra.mxu0 %v1486
        %2054 = vmatprep.subr.bf16.mxu0 %v1489
        %2055 = vmatpush1.bf16.msra.mxu0 %v1488
        %2056 = vmatprep.subr.bf16.mxu0 %v1491
        %2057 = vmatpush1.bf16.msra.mxu0 %v1490
        %2058 = vmatprep.subr.bf16.mxu0 %v1493
        %2059 = vmatpush1.bf16.msra.mxu0 %v1492
        %2060 = vmatprep.subr.bf16.mxu0 %v1495
        %2061 = vmatpush1.bf16.msra.mxu0 %v1494
        %2062 = vmatprep.subr.bf16.mxu0 %v1497
        %2063 = vmatpush1.bf16.msra.mxu0 %v1496
        %2064 = vmatprep.subr.bf16.mxu0 %v1499
        %2065 = vmatpush1.bf16.msra.mxu0 %v1498
        %2066 = vmatprep.subr.bf16.mxu0 %v1501
        %2067 = vmatpush1.bf16.msra.mxu0 %v1500
        %2068 = vmatprep.subr.bf16.mxu0 %v1503
        %2069 = vmatpush1.bf16.msra.mxu0 %v1502
        %2070 = vmatprep.subr.bf16.mxu0 %v1505
        %2071 = vmatpush1.bf16.msra.mxu0 %v1504
        %2072 = vmatprep.mubr.bf16.mxu0 %v565
        %2073 = vmatmul.mubr.bf16.gmra.mrb[0].mxu0 %v564
        %v2074 = vpop.f32.mrb[0].mxu0
        %v2075 = vadd.f32 %v2032, %v2074
        %v2076 = vpop.f32.mrb[0].mxu0
        %v2077 = vadd.f32 %v2034, %v2076
        %v2078 = vpop.f32.mrb[0].mxu0
        %v2079 = vadd.f32 %v2036, %v2078
        %v2080 = vpop.f32.mrb[0].mxu0
        %v2081 = vadd.f32 %v2038, %v2080
        %2082 = vdwg.mxu0
        %2083 = vmatprep.subr.bf16.mxu0 %v1507
        %2084 = vmatpush1.bf16.msra.mxu0 %v1506
        %2085 = vmatprep.subr.bf16.mxu0 %v1509
        %2086 = vmatpush1.bf16.msra.mxu0 %v1508
        %2087 = vmatprep.subr.bf16.mxu0 %v1511
        %2088 = vmatpush1.bf16.msra.mxu0 %v1510
        %2089 = vmatprep.subr.bf16.mxu0 %v1513
        %2090 = vmatpush1.bf16.msra.mxu0 %v1512
        %2091 = vmatprep.subr.bf16.mxu0 %v1515
        %2092 = vmatpush1.bf16.msra.mxu0 %v1514
        %2093 = vmatprep.subr.bf16.mxu0 %v1517
        %2094 = vmatpush1.bf16.msra.mxu0 %v1516
        %2095 = vmatprep.subr.bf16.mxu0 %v1519
        %2096 = vmatpush1.bf16.msra.mxu0 %v1518
        %2097 = vmatprep.subr.bf16.mxu0 %v1521
        %2098 = vmatpush1.bf16.msra.mxu0 %v1520
        %2099 = vmatprep.subr.bf16.mxu0 %v1523
        %2100 = vmatpush1.bf16.msra.mxu0 %v1522
        %2101 = vmatprep.subr.bf16.mxu0 %v1525
        %2102 = vmatpush1.bf16.msra.mxu0 %v1524
        %2103 = vmatprep.subr.bf16.mxu0 %v1527
        %2104 = vmatpush1.bf16.msra.mxu0 %v1526
        %2105 = vmatprep.subr.bf16.mxu0 %v1529
        %2106 = vmatpush1.bf16.msra.mxu0 %v1528
        %2107 = vmatprep.subr.bf16.mxu0 %v1531
        %2108 = vmatpush1.bf16.msra.mxu0 %v1530
        %2109 = vmatprep.subr.bf16.mxu0 %v1533
        %2110 = vmatpush1.bf16.msra.mxu0 %v1532
        %2111 = vmatprep.subr.bf16.mxu0 %v1535
        %2112 = vmatpush1.bf16.msra.mxu0 %v1534
        %2113 = vmatprep.subr.bf16.mxu0 %v1537
        %2114 = vmatpush1.bf16.msra.mxu0 %v1536
        %2115 = vmatprep.mubr.bf16.mxu0 %v567
        %2116 = vmatmul.mubr.bf16.gmra.mrb[0].mxu0 %v566
        %v2117 = vpop.f32.mrb[0].mxu0
        %v2118 = vadd.f32 %v2075, %v2117
        %v2119 = vpop.f32.mrb[0].mxu0
        %v2120 = vadd.f32 %v2077, %v2119
        %v2121 = vpop.f32.mrb[0].mxu0
        %v2122 = vadd.f32 %v2079, %v2121
        %v2123 = vpop.f32.mrb[0].mxu0
        %v2124 = vadd.f32 %v2081, %v2123
        %2125 = vdwg.mxu0
        %2126 = vmatprep.subr.bf16.mxu0 %v1539
        %2127 = vmatpush1.bf16.msra.mxu0 %v1538
        %2128 = vmatprep.subr.bf16.mxu0 %v1541
        %2129 = vmatpush1.bf16.msra.mxu0 %v1540
        %2130 = vmatprep.subr.bf16.mxu0 %v1543
        %2131 = vmatpush1.bf16.msra.mxu0 %v1542
        %2132 = vmatprep.subr.bf16.mxu0 %v1545
        %2133 = vmatpush1.bf16.msra.mxu0 %v1544
        %2134 = vmatprep.subr.bf16.mxu0 %v1547
        %2135 = vmatpush1.bf16.msra.mxu0 %v1546
        %2136 = vmatprep.subr.bf16.mxu0 %v1549
        %2137 = vmatpush1.bf16.msra.mxu0 %v1548
        %2138 = vmatprep.subr.bf16.mxu0 %v1551
        %2139 = vmatpush1.bf16.msra.mxu0 %v1550
        %2140 = vmatprep.subr.bf16.mxu0 %v1553
        %2141 = vmatpush1.bf16.msra.mxu0 %v1552
        %2142 = vmatprep.subr.bf16.mxu0 %v1555
        %2143 = vmatpush1.bf16.msra.mxu0 %v1554
        %2144 = vmatprep.subr.bf16.mxu0 %v1557
        %2145 = vmatpush1.bf16.msra.mxu0 %v1556
        %2146 = vmatprep.subr.bf16.mxu0 %v1559
        %2147 = vmatpush1.bf16.msra.mxu0 %v1558
        %2148 = vmatprep.subr.bf16.mxu0 %v1561
        %2149 = vmatpush1.bf16.msra.mxu0 %v1560
        %2150 = vmatprep.subr.bf16.mxu0 %v1563
        %2151 = vmatpush1.bf16.msra.mxu0 %v1562
        %2152 = vmatprep.subr.bf16.mxu0 %v1565
        %2153 = vmatpush1.bf16.msra.mxu0 %v1564
        %2154 = vmatprep.subr.bf16.mxu0 %v1567
        %2155 = vmatpush1.bf16.msra.mxu0 %v1566
        %2156 = vmatprep.subr.bf16.mxu0 %v1569
        %2157 = vmatpush1.bf16.msra.mxu0 %v1568
        %2158 = vmatprep.mubr.bf16.mxu0 %v569
        %2159 = vmatmul.mubr.bf16.gmra.mrb[0].mxu0 %v568
        %v2160 = vpop.f32.mrb[0].mxu0
        %v2161 = vadd.f32 %v2118, %v2160
        %v2162 = vpop.f32.mrb[0].mxu0
        %v2163 = vadd.f32 %v2120, %v2162
        %v2164 = vpop.f32.mrb[0].mxu0
        %v2165 = vadd.f32 %v2122, %v2164
        %v2166 = vpop.f32.mrb[0].mxu0
        %v2167 = vadd.f32 %v2124, %v2166
        %2168 = vdwg.mxu0
        %2169 = vmatprep.subr.bf16.mxu0 %v1571
        %2170 = vmatpush1.bf16.msra.mxu0 %v1570
        %2171 = vmatprep.subr.bf16.mxu0 %v1573
        %2172 = vmatpush1.bf16.msra.mxu0 %v1572
        %2173 = vmatprep.subr.bf16.mxu0 %v1575
        %2174 = vmatpush1.bf16.msra.mxu0 %v1574
        %2175 = vmatprep.subr.bf16.mxu0 %v1577
        %2176 = vmatpush1.bf16.msra.mxu0 %v1576
        %2177 = vmatprep.subr.bf16.mxu0 %v1579
        %2178 = vmatpush1.bf16.msra.mxu0 %v1578
        %2179 = vmatprep.subr.bf16.mxu0 %v1581
        %2180 = vmatpush1.bf16.msra.mxu0 %v1580
        %2181 = vmatprep.subr.bf16.mxu0 %v1583
        %2182 = vmatpush1.bf16.msra.mxu0 %v1582
        %2183 = vmatprep.subr.bf16.mxu0 %v1585
        %2184 = vmatpush1.bf16.msra.mxu0 %v1584
        %2185 = vmatprep.subr.bf16.mxu0 %v1587
        %2186 = vmatpush1.bf16.msra.mxu0 %v1586
        %2187 = vmatprep.subr.bf16.mxu0 %v1589
        %2188 = vmatpush1.bf16.msra.mxu0 %v1588
        %2189 = vmatprep.subr.bf16.mxu0 %v1591
        %2190 = vmatpush1.bf16.msra.mxu0 %v1590
        %2191 = vmatprep.subr.bf16.mxu0 %v1593
        %2192 = vmatpush1.bf16.msra.mxu0 %v1592
        %2193 = vmatprep.subr.bf16.mxu0 %v1595
        %2194 = vmatpush1.bf16.msra.mxu0 %v1594
        %2195 = vmatprep.subr.bf16.mxu0 %v1597
        %2196 = vmatpush1.bf16.msra.mxu0 %v1596
        %2197 = vmatprep.subr.bf16.mxu0 %v1599
        %2198 = vmatpush1.bf16.msra.mxu0 %v1598
        %2199 = vmatprep.subr.bf16.mxu0 %v1601
        %2200 = vmatpush1.bf16.msra.mxu0 %v1600
        %2201 = vmatprep.mubr.bf16.mxu0 %v571
        %2202 = vmatmul.mubr.bf16.gmra.mrb[0].mxu0 %v570
        %v2203 = vpop.f32.mrb[0].mxu0
        %v2204 = vadd.f32 %v2161, %v2203
        %v2205 = vpop.f32.mrb[0].mxu0
        %v2206 = vadd.f32 %v2163, %v2205
        %v2207 = vpop.f32.mrb[0].mxu0
        %v2208 = vadd.f32 %v2165, %v2207
        %v2209 = vpop.f32.mrb[0].mxu0
        %v2210 = vadd.f32 %v2167, %v2209
        %2211 = vdwg.mxu0
        %2212 = vmatprep.subr.bf16.mxu0 %v1603
        %2213 = vmatpush1.bf16.msra.mxu0 %v1602
        %2214 = vmatprep.subr.bf16.mxu0 %v1605
        %2215 = vmatpush1.bf16.msra.mxu0 %v1604
        %2216 = vmatprep.subr.bf16.mxu0 %v1607
        %2217 = vmatpush1.bf16.msra.mxu0 %v1606
        %2218 = vmatprep.subr.bf16.mxu0 %v1609
        %2219 = vmatpush1.bf16.msra.mxu0 %v1608
        %2220 = vmatprep.subr.bf16.mxu0 %v1611
        %2221 = vmatpush1.bf16.msra.mxu0 %v1610
        %2222 = vmatprep.subr.bf16.mxu0 %v1613
        %2223 = vmatpush1.bf16.msra.mxu0 %v1612
        %2224 = vmatprep.subr.bf16.mxu0 %v1615
        %2225 = vmatpush1.bf16.msra.mxu0 %v1614
        %2226 = vmatprep.subr.bf16.mxu0 %v1617
        %2227 = vmatpush1.bf16.msra.mxu0 %v1616
        %2228 = vmatprep.subr.bf16.mxu0 %v1619
        %2229 = vmatpush1.bf16.msra.mxu0 %v1618
        %2230 = vmatprep.subr.bf16.mxu0 %v1621
        %2231 = vmatpush1.bf16.msra.mxu0 %v1620
        %2232 = vmatprep.subr.bf16.mxu0 %v1623
        %2233 = vmatpush1.bf16.msra.mxu0 %v1622
        %2234 = vmatprep.subr.bf16.mxu0 %v1625
        %2235 = vmatpush1.bf16.msra.mxu0 %v1624
        %2236 = vmatprep.subr.bf16.mxu0 %v1627
        %2237 = vmatpush1.bf16.msra.mxu0 %v1626
        %2238 = vmatprep.subr.bf16.mxu0 %v1629
        %2239 = vmatpush1.bf16.msra.mxu0 %v1628
        %2240 = vmatprep.subr.bf16.mxu0 %v1631
        %2241 = vmatpush1.bf16.msra.mxu0 %v1630
        %2242 = vmatprep.subr.bf16.mxu0 %v1633
        %2243 = vmatpush1.bf16.msra.mxu0 %v1632
        %2244 = vmatprep.mubr.bf16.mxu0 %v573
        %2245 = vmatmul.mubr.bf16.gmra.mrb[0].mxu0 %v572
        %v2246 = vpop.f32.mrb[0].mxu0
        %v2247 = vadd.f32 %v2204, %v2246
        %v2248 = vpop.f32.mrb[0].mxu0
        %v2249 = vadd.f32 %v2206, %v2248
        %v2250 = vpop.f32.mrb[0].mxu0
        %v2251 = vadd.f32 %v2208, %v2250
        %v2252 = vpop.f32.mrb[0].mxu0
        %v2253 = vadd.f32 %v2210, %v2252
        %2254 = vdwg.mxu0
        %2255 = vmatprep.subr.bf16.mxu0 %v1635
        %2256 = vmatpush1.bf16.msra.mxu0 %v1634
        %2257 = vmatprep.subr.bf16.mxu0 %v1637
        %2258 = vmatpush1.bf16.msra.mxu0 %v1636
        %2259 = vmatprep.subr.bf16.mxu0 %v1639
        %2260 = vmatpush1.bf16.msra.mxu0 %v1638
        %2261 = vmatprep.subr.bf16.mxu0 %v1641
        %2262 = vmatpush1.bf16.msra.mxu0 %v1640
        %2263 = vmatprep.subr.bf16.mxu0 %v1643
        %2264 = vmatpush1.bf16.msra.mxu0 %v1642
        %2265 = vmatprep.subr.bf16.mxu0 %v1645
        %2266 = vmatpush1.bf16.msra.mxu0 %v1644
        %2267 = vmatprep.subr.bf16.mxu0 %v1647
        %2268 = vmatpush1.bf16.msra.mxu0 %v1646
        %2269 = vmatprep.subr.bf16.mxu0 %v1649
        %2270 = vmatpush1.bf16.msra.mxu0 %v1648
        %2271 = vmatprep.subr.bf16.mxu0 %v1651
        %2272 = vmatpush1.bf16.msra.mxu0 %v1650
        %2273 = vmatprep.subr.bf16.mxu0 %v1653
        %2274 = vmatpush1.bf16.msra.mxu0 %v1652
        %2275 = vmatprep.subr.bf16.mxu0 %v1655
        %2276 = vmatpush1.bf16.msra.mxu0 %v1654
        %2277 = vmatprep.subr.bf16.mxu0 %v1657
        %2278 = vmatpush1.bf16.msra.mxu0 %v1656
        %2279 = vmatprep.subr.bf16.mxu0 %v1659
        %2280 = vmatpush1.bf16.msra.mxu0 %v1658
        %2281 = vmatprep.subr.bf16.mxu0 %v1661
        %2282 = vmatpush1.bf16.msra.mxu0 %v1660
        %2283 = vmatprep.subr.bf16.mxu0 %v1663
        %2284 = vmatpush1.bf16.msra.mxu0 %v1662
        %2285 = vmatprep.subr.bf16.mxu0 %v1665
        %2286 = vmatpush1.bf16.msra.mxu0 %v1664
        %2287 = vmatprep.mubr.bf16.mxu0 %v575
        %2288 = vmatmul.mubr.bf16.gmra.mrb[0].mxu0 %v574
        %v2289 = vpop.f32.mrb[0].mxu0
        %v2290 = vadd.f32 %v2247, %v2289
        %v2291 = vpop.f32.mrb[0].mxu0
        %v2292 = vadd.f32 %v2249, %v2291
        %v2293 = vpop.f32.mrb[0].mxu0
        %v2294 = vadd.f32 %v2251, %v2293
        %v2295 = vpop.f32.mrb[0].mxu0
        %v2296 = vadd.f32 %v2253, %v2295
        %2297 = vdwg.mxu0
        %2298 = vmatprep.subr.bf16.mxu0 %v1667
        %2299 = vmatpush1.bf16.msra.mxu0 %v1666
        %2300 = vmatprep.subr.bf16.mxu0 %v1669
        %2301 = vmatpush1.bf16.msra.mxu0 %v1668
        %2302 = vmatprep.subr.bf16.mxu0 %v1671
        %2303 = vmatpush1.bf16.msra.mxu0 %v1670
        %2304 = vmatprep.subr.bf16.mxu0 %v1673
        %2305 = vmatpush1.bf16.msra.mxu0 %v1672
        %2306 = vmatprep.subr.bf16.mxu0 %v1675
        %2307 = vmatpush1.bf16.msra.mxu0 %v1674
        %2308 = vmatprep.subr.bf16.mxu0 %v1677
        %2309 = vmatpush1.bf16.msra.mxu0 %v1676
        %2310 = vmatprep.subr.bf16.mxu0 %v1679
        %2311 = vmatpush1.bf16.msra.mxu0 %v1678
        %2312 = vmatprep.subr.bf16.mxu0 %v1681
        %2313 = vmatpush1.bf16.msra.mxu0 %v1680
        %2314 = vmatprep.subr.bf16.mxu0 0
        %2315 = vmatpush1.bf16.msra.mxu0 0
        %2316 = vmatprep.subr.bf16.mxu0 0
        %2317 = vmatpush1.bf16.msra.mxu0 0
        %2318 = vmatprep.subr.bf16.mxu0 0
        %2319 = vmatpush1.bf16.msra.mxu0 0
        %2320 = vmatprep.subr.bf16.mxu0 0
        %2321 = vmatpush1.bf16.msra.mxu0 0
        %2322 = vmatprep.subr.bf16.mxu0 0
        %2323 = vmatpush1.bf16.msra.mxu0 0
        %2324 = vmatprep.subr.bf16.mxu0 0
        %2325 = vmatpush1.bf16.msra.mxu0 0
        %2326 = vmatprep.subr.bf16.mxu0 0
        %2327 = vmatpush1.bf16.msra.mxu0 0
        %2328 = vmatprep.subr.bf16.mxu0 0
        %2329 = vmatpush1.bf16.msra.mxu0 0
        %2330 = vmatprep.mubr.bf16.mxu0 0
        %2331 = vmatmul.mubr.bf16.gmra.mrb[0].mxu0 %v576
        %v2332 = vpop.f32.mrb[0].mxu0
        %v2333 = vadd.f32 %v2290, %v2332
        %v2334 = vpop.f32.mrb[0].mxu0
        %v2335 = vadd.f32 %v2292, %v2334
        %v2336 = vpop.f32.mrb[0].mxu0
        %v2337 = vadd.f32 %v2294, %v2336
        %v2338 = vpop.f32.mrb[0].mxu0
        %v2339 = vadd.f32 %v2296, %v2338
        %2340 = vdwg.mxu0
        %2341 = vst [vmem:[%s193] sm:$0xff] %v2333
        %2342 = vst [vmem:[%s193 + $0x8] sm:$0xff] %v2335
        %2343 = vst [vmem:[%s193 + $0x10] sm:$0xff] %v2337
        %2344 = vst [vmem:[%s193 + $0x18] sm:$0xff] %v2339
        %s2345 = sand.u32 %s100, 1
        %s2346 = sand.u32 %s100, 1
        %s2347 = smul.addr %s2346, 32
        %s2348 = scalar_lea.vmem [#allocation2], %s2347
        // Predicated region
        $region29: #{apply.1} parent=27 // pred_check
          %p2349 = pneg %p110
        $region30: #{apply.1} parent=27 // pred_check_branch
          %2351 = sbr.rel (%p2349) target = $region32
        $region31: #{apply.1} parent=27 // pred_region
          %s2352 = sadd.s32 %s18, %s19
          %s2353 = smul.u32 2, %s20
          %s2354 = smul.u32 2, %s2352
          %s2355 = smul.addr %s2353, 6
          %s2356 = sadd.s32 %s2354, %s2355
          %s2357 = smul.addr %s2356, 8
          %s2358 = scalar_lea.vmem %s2, %s2357
          // Predicated region
          $region33: #{apply.1} parent=31 // pred_check
            _
          $region34: #{apply.1} parent=31 // pred_check_branch
            %2360 = sbr.rel (0) target = $region36
          $region35: #{apply.1} parent=31 // pred_region
            // Predicated region
            $region37: #{apply.1} parent=35 // pred_check
              _
            $region38: #{apply.1} parent=35 // pred_check_branch
              %2362 = sbr.rel (0) target = $region40
            $region39: #{apply.1} parent=35 // pred_region
              loop: start=0, step=1, limit=1
              $region41: #{apply.1} parent=39 // loop_pre_header
                _
              $region42: #{apply.1} parent=39 // loop_header
                %s2364 = sphi 0, %s2368
                %p2365 = scmp.ge.s32.totalorder %s2364, 1
                %s2369 = sphi %s2348, %s2348
                %s2370 = sphi %s2358, %s2358
              $region43: #{apply.1} parent=39 // loop_header_branch
                %2367 = sbr.rel (%p2365) target = $region47
              $region44: #{apply.1} parent=39 // loop_body
                %v2371 = vld [vmem:[%s2369] sm:$0xff]
                %2372 = vst [vmem:[%s2370] sm:$0xff] %v2371
                %v2373 = vld [vmem:[%s2369 + $0x8] sm:$0xff]
                %2374 = vst [vmem:[%s2370 + $0x8] sm:$0xff] %v2373
                %v2375 = vld [vmem:[%s2369 + $0x10] sm:$0xff]
                %2376 = vst [vmem:[%s2370 + $0x30] sm:$0xff] %v2375
                %v2377 = vld [vmem:[%s2369 + $0x18] sm:$0xff]
                %2378 = vst [vmem:[%s2370 + $0x38] sm:$0xff] %v2377
              $region45: #{apply.1} parent=39 // loop_footer
                %s2368 = sadd.s32 1, %s2364
              $region46: #{apply.1} parent=39 // loop_footer_branch
                %2363 = sbr.rel target = $region42
              $region47: #{apply.1} parent=39 // loop_exit
                _
            $region40: #{apply.1} parent=35 // pred_fallthru
              _
            // Predicated region
            $region48: #{apply.1} parent=35 // pred_check
              _
            $region49: #{apply.1} parent=35 // pred_check_branch
              %2380 = sbr.rel target = $region51
            $region50: #{apply.1} parent=35 // pred_region
              _
            $region51: #{apply.1} parent=35 // pred_fallthru
              _
          $region36: #{apply.1} parent=31 // pred_fallthru
            _
          %2381 = vnop
        $region32: #{apply.1} parent=27 // pred_fallthru
          _
      $region28: #{apply.1} parent=5 // pred_fallthru
        _
      %p2382 = scmp.le.s32.totalorder 2, %s8
      // Predicated region
      $region52: #{apply.1} parent=5 // pred_check
        %p2383 = pneg %p2382
      $region53: #{apply.1} parent=5 // pred_check_branch
        %2385 = sbr.rel (%p2383) target = $region55
      $region54: #{apply.1} parent=5 // pred_region
        %s2386 = ssub.s32 %s8, 2
        // Predicated region
        $region56: #{apply.1} parent=54 // pred_check
          %p2387 = pneg %p116
        $region57: #{apply.1} parent=54 // pred_check_branch
          %2389 = sbr.rel (%p2387) target = $region59
        $region58: #{apply.1} parent=54 // pred_region
          %s2390 = sand.u32 %s101, 1
          %s2391 = sand.u32 %s101, 1
          %s2392 = smul.addr %s2391, 32
          %s2393 = scalar_lea.vmem [#allocation2], %s2392
        $region59: #{apply.1} parent=54 // pred_fallthru
          _
      $region55: #{apply.1} parent=5 // pred_fallthru
        _
    $region6: #{apply.1} parent=1 // loop_footer
      %s12 = sadd.s32 1, %s8
    $region7: #{apply.1} parent=1 // loop_footer_branch
      %7 = sbr.rel target = $region3
    $region8: #{apply.1} parent=1 // loop_exit
      _

</llo_original>
